<compile_context>
chip_gen: v7x
topology: tpu7x:2x2x1
jax: 0.10.0
libtpu: 0.0.40
codegen_flags: <defaults>
</compile_context>

<pallas_src>
import jax
import jax.numpy as jnp
from jax.experimental import pallas as pl
from jax.experimental.pallas import tpu as pltpu

LANES = 128              # TPU lane width: original rows packed per lane-dense row
BLOCK_ROWS = 512         # packed rows per tile (512 * 128*F * 4B = 4 MiB f32 at F=16)
MIN_GRID_STEPS = 8       # amortize per-step overhead / keep both v7x TCs fed
VMEM_BUDGET = 40 << 20   # stay well below v7x's 64 MiB physical VMEM


def _cdiv(a, b):
    return -(-a // b)


def pack_conv_weight(conv_weight):
    """Build the (128*F, 128) block-diagonal weight ONCE per parameter set.

    W2[c*F + f, c] = w[f], zeros elsewhere, stored in bf16: the MXU consumes bf16
    operands at DEFAULT precision anyway, and bf16 halves the weight's one-time
    HBM read and its VMEM residency."""
    F = conv_weight.shape[-1]
    w = conv_weight.reshape(F).astype(jnp.bfloat16)
    return jnp.kron(jnp.eye(LANES, dtype=jnp.bfloat16), w.reshape(F, 1))


def _conv1xf_relu_kernel(x_ref, w_ref, b_ref, o_ref):
    # x_ref: (TMB, 128*F) lane-dense: 128 consecutive original rows per packed row
    # w_ref: (128*F, 128)  block-diagonal conv weight (bf16), VMEM-resident
    # b_ref: (1,)          conv bias scalar (f32) in SMEM
    # o_ref: (TMB, 128)    relu(x @ W2 + b): full-lane, unmasked stores
    x = x_ref[...].astype(jnp.bfloat16)      # single-pass bf16 MXU on all TPU gens
    acc = jnp.dot(x, w_ref[...], preferred_element_type=jnp.float32)
    o_ref[...] = jnp.maximum(acc + b_ref[0], 0.0).astype(o_ref.dtype)


def actor_forward(obs, conv_weight, conv_bias, *, packed_weight=None,
                  block_rows=BLOCK_ROWS):
    """obs: (N, 1, H, F) NCHW (f32 or bf16).
    conv_weight: (1, 1, 1, F) (PyTorch Conv2d OIHW layout).  conv_bias: (1,).
    packed_weight: optional precomputed pack_conv_weight(conv_weight).
    Returns logits of shape (N, H) == Flatten(ReLU(Conv2d(obs)))."""
    N, C, H, F = obs.shape
    assert C == 1
    M = N * H
    in_dtype = obs.dtype

    w = conv_weight.reshape(F)
    b = conv_bias.reshape(1).astype(jnp.float32)
    if packed_weight is None:     # hoist via pack_conv_weight() in real inference loops
        packed_weight = pack_conv_weight(conv_weight)

    x = obs.reshape(M, F)                     # zero-cost row-major reshape
    M_full = (M // LANES) * LANES             # rows forming complete 128-row groups
    M_rem = M - M_full                        # <128-row tail: tiny einsum, no padding

    pieces = []
    if M_full:
        M2 = M_full // LANES
        itemsize = jnp.dtype(in_dtype).itemsize

        # ---- tile size: biggest tile within the VMEM budget, >= 2 grid steps ----
        per_row = (2 * LANES * F * itemsize        # input tile, double-buffered
                   + 2 * LANES * itemsize)         # output tile, double-buffered
        if jnp.dtype(in_dtype) != jnp.dtype(jnp.bfloat16):
            per_row += LANES * F * 2               # in-kernel bf16 cast temp
        w_bytes = 2 * (LANES * F) * LANES * 2      # bf16 weight buffers (fetched once)
        tmb = min(block_rows, max(8, (VMEM_BUDGET - w_bytes) // per_row))
        while tmb > 64 and _cdiv(M2, tmb) < MIN_GRID_STEPS:
            tmb //= 2
        while tmb > 8 and _cdiv(M2, tmb) < 2:      # v7x: 2 TCs need >= 2 grid steps
            tmb //= 2
        tmb = max(8, (tmb // 8) * 8)               # (8,128) rule on the sublane dim
        if M2 <= tmb:
            tmb = M2                               # tiny input: one full block
        grid = _cdiv(M2, tmb)                      # partial last block handled by Pallas

        vmem_bytes = tmb * per_row + w_bytes
        vmem_limit = min(48 << 20, max(32 << 20, vmem_bytes + (8 << 20)))

        # Lane-dense repack.  Pure (free) reshape when M % 128 == 0; otherwise XLA
        # materializes the prefix once (still no pad-to-tile-multiple rewrite).
        x2 = x[:M_full].reshape(M2, LANES * F)

        cost = pl.CostEstimate(
            flops=2 * M_full * F * LANES,          # actual MXU flops (block-diag)
            transcendentals=0,
            bytes_accessed=M_full * F * itemsize   # input read (dominant)
            + M_full * itemsize                    # output write
            + LANES * F * LANES * 2,               # one-time bf16 weight read
        )

        out_main = pl.pallas_call(
            _conv1xf_relu_kernel,
            out_shape=jax.ShapeDtypeStruct((M2, LANES), in_dtype),
            grid=(grid,),
            in_specs=[
                pl.BlockSpec((tmb, LANES * F), lambda i: (i, 0)),   # pipelined input
                # Constant index_map -> DMA'd from HBM once, stays VMEM-resident.
                pl.BlockSpec((LANES * F, LANES), lambda i: (0, 0)),
                pl.BlockSpec(memory_space=pltpu.MemorySpace.SMEM),  # bias scalar
            ],
            out_specs=pl.BlockSpec((tmb, LANES), lambda i: (i, 0)),
            compiler_params=pltpu.CompilerParams(
                dimension_semantics=("parallel",),  # v7x: shard grid over both TCs
                vmem_limit_bytes=vmem_limit),
            cost_estimate=cost,
        )(x2, packed_weight, b)
        pieces.append(out_main.reshape(M_full))

    if M_rem:
        # <128-row remainder computed outside the kernel instead of padding:
        # jnp.pad would rewrite the entire input in HBM for this memory-bound op.
        tail = jnp.maximum(
            x[M_full:].astype(jnp.float32) @ w.astype(jnp.float32) + b[0], 0.0
        ).astype(in_dtype)
        pieces.append(tail)

    out = pieces[0] if len(pieces) == 1 else jnp.concatenate(pieces)
    return out.reshape(N, H)


if __name__ == "__main__":
    key = jax.random.PRNGKey(0)
    k_obs, k_w, k_b = jax.random.split(key, 3)

    # Forward-consistent shapes: obs is NCHW = (batch, 1, H, feature_dim).
    # H is chosen so the flattened row count N*H = 2192 exercises the packed Pallas
    # path (17 packed rows -> multi-step grid with a partial last block) AND the
    # <128-row einsum tail.  Data is still tiny (~140 KB).
    N, H, feature_dim = 2, 1096, 16
    obs = jax.random.normal(k_obs, (N, 1, H, feature_dim), dtype=jnp.float32)

    # Deterministic synthetic parameters (PyTorch Conv2d(1,1,[1,feature_dim]) shapes).
    conv_weight = jax.random.normal(k_w, (1, 1, 1, feature_dim), dtype=jnp.float32) * 0.1
    conv_bias = jax.random.normal(k_b, (1,), dtype=jnp.float32) * 0.1

    # Precompute the block-diagonal weight once (per parameter set, not per call).
    w2 = pack_conv_weight(conv_weight)

    fwd = jax.jit(actor_forward)
    logits = jax.block_until_ready(fwd(obs, conv_weight, conv_bias, packed_weight=w2))

    # Pure-JAX f32 reference of the same forward pass.  The kernel feeds the MXU
    # bf16 operands (single-pass DEFAULT precision), so compare at bf16 tolerance.
    ref = jnp.maximum(
        jnp.einsum("nchf,f->nh", obs, conv_weight[0, 0, 0]) + conv_bias[0], 0.0
    )
    assert logits.shape == (N, H)
    assert jnp.allclose(logits, ref, atol=3e-2, rtol=3e-2), (
        float(jnp.max(jnp.abs(logits - ref))))

    print("KERNEL_OK")
</pallas_src>

<mosaic_0001>
module attributes {stable_mosaic.version = 11 : i64} {
  func.func @_conv1xf_relu_kernel(%arg0: i32, %arg1: memref<16x2048xf32, #tpu.memory_space<vmem>>, %arg2: memref<2048x128xbf16, #tpu.memory_space<vmem>>, %arg3: memref<1xf32, #tpu.memory_space<smem>>, %arg4: memref<16x128xf32, #tpu.memory_space<vmem>>) attributes {dimension_semantics = [#tpu.dimension_semantics<parallel>], iteration_bounds = array<i64: 2>, scalar_prefetch = 0 : i64, scratch_operands = 0 : i64, tpu.core_type = #tpu.core_type<tc>, window_params = [{transform_indices = @transform_0, window_bounds = array<i64: 16, 2048>}, {pipeline_mode = #tpu.pipeline_mode<synchronous>, transform_indices = @transform_1, window_bounds = array<i64: 2048, 128>}, {transform_indices = @transform_2, window_bounds = array<i64: 1>}, {transform_indices = @transform_3, window_bounds = array<i64: 16, 128>}]} {
    %c0 = arith.constant 0 : index
    %c0_0 = arith.constant 0 : index
    %0 = vector.load %arg1[%c0, %c0_0] : memref<16x2048xf32, #tpu.memory_space<vmem>>, vector<16x2048xf32>
    %1 = arith.truncf %0 : vector<16x2048xf32> to vector<16x2048xbf16>
    %c0_1 = arith.constant 0 : index
    %c0_2 = arith.constant 0 : index
    %2 = vector.load %arg2[%c0_1, %c0_2] : memref<2048x128xbf16, #tpu.memory_space<vmem>>, vector<2048x128xbf16>
    %cst = arith.constant dense<0.000000e+00> : vector<16x128xf32>
    %3 = tpu.matmul %1, %2, %cst {dimension_numbers = #tpu.dot_dimension_numbers<[1], [0], [0], [1], [0, 0, 1, 1], [], []>} : vector<16x2048xbf16>, vector<2048x128xbf16>, vector<16x128xf32> -> vector<16x128xf32>
    %c0_3 = arith.constant 0 : index
    %4 = memref.load %arg3[%c0_3] : memref<1xf32, #tpu.memory_space<smem>>
    %5 = vector.broadcast %4 : f32 to vector<16x128xf32>
    %6 = arith.addf %3, %5 : vector<16x128xf32>
    %cst_4 = arith.constant 0.000000e+00 : f32
    %7 = vector.broadcast %cst_4 : f32 to vector<16x128xf32>
    %8 = arith.maximumf %6, %7 : vector<16x128xf32>
    %c0_5 = arith.constant 0 : index
    %c0_6 = arith.constant 0 : index
    %9 = vector.load %arg4[%c0_5, %c0_6] : memref<16x128xf32, #tpu.memory_space<vmem>>, vector<16x128xf32>
    tpu.vector_store %arg4[%c0_5, %c0_6], %8 {strides = array<i32>} : memref<16x128xf32, #tpu.memory_space<vmem>>, vector<16x128xf32>,
    return
  }
  func.func @transform_0(%arg0: i32) -> (i32, i32) {
    %c0_i32 = arith.constant 0 : i32
    %c0_i32_0 = arith.constant 0 : i32
    return %arg0, %c0_i32 : i32, i32
  }
  func.func @transform_1(%arg0: i32) -> (i32, i32) {
    %c0_i32 = arith.constant 0 : i32
    %c0_i32_0 = arith.constant 0 : i32
    %c0_i32_1 = arith.constant 0 : i32
    return %c0_i32, %c0_i32_0 : i32, i32
  }
  func.func @transform_2(%arg0: i32) -> i32 {
    %c0_i32 = arith.constant 0 : i32
    %c0_i32_0 = arith.constant 0 : i32
    return %c0_i32 : i32
  }
  func.func @transform_3(%arg0: i32) -> (i32, i32) {
    %c0_i32 = arith.constant 0 : i32
    %c0_i32_0 = arith.constant 0 : i32
    return %arg0, %c0_i32 : i32, i32
  }
}

</mosaic_0001>

<llo_original>
// kernel: actor_forward.1
$region0: #{actor_forward.1}
  #allocation0 [shape = 'u32[]', space=smem, size = 0x4, offset = 0x4, fixed_abs, tag = 'smem constant byte address 0x4 - core index']
  #allocation1 [shape = 'u32[144,128]{1,0:T(1,128)}', space=vmem, size = 0x12000, scoped, tag = 'internal scratch']
  #allocation2 [shape = 'f32[1]{0:T(128)S(6)}', space=smem, size = 0x200, scoped, tag = 'scoped memory for actor_forward.1']
  %s0 = inlined_call_operand.vmem [shape: f32[17,2048], index: 0, kind: input, shape index: {}]
  %s1 = inlined_call_operand.vmem [shape: bf16[2048,128], index: 1, kind: input, shape index: {}]
  %s2 = inlined_call_operand.<no memory space> [shape: f32[1], index: 2, kind: input, shape index: {}]
  %s3 = inlined_call_operand.vmem [shape: f32[17,128], index: 3, kind: output, shape index: {}]
  %s4 = sld [smem:[#allocation0]]
  $region93: #{actor_forward.1} parent=0
    _
  %s6 = ssub.s32 1, %s4
  %s7 = scalar_select 0, %s6, %s4
  %8 = sst [smem:[#allocation2]] %s2
  $region1: #{actor_forward.1} parent=0
    #allocation3 [shape = 'u8[16384]{0}', space=vmem, size = 0x4000, scoped, tag = 'output window, operand 0']
    loop: start=0, step=1, limit=4
    $region2: #{actor_forward.1} parent=1 // loop_pre_header
      _
    $region3: #{actor_forward.1} parent=1 // loop_header
      %s10 = sphi 0, %s14
      %p11 = scmp.ge.s32.totalorder %s10, 4
      %s20 = sphi 0, %s22
      %s23 = sphi 0, %s20
      %s24 = sphi 0, %s23
      %s40 = sphi 0, %s24
      %s44 = sphi 0, %s44
      %s46 = sphi 0, %s44
      %s47 = sphi 0, %s46
      %s61 = sphi 0, %s47
      %s65 = sphi 0, %s65
      %s67 = sphi 0, %s65
      %s68 = sphi 0, %s67
      %s82 = sphi 0, %s68
      %s88 = sphi 0, %s90
      %s91 = sphi 0, %s88
      %s92 = sphi 0, %s91
      %s108 = sphi 0, %s92
    $region4: #{actor_forward.1} parent=1 // loop_header_branch
      %13 = sbr.rel (%p11) target = $region8
    $region5: #{actor_forward.1} parent=1 // loop_body
      %s15 = ssub.s32 %s10, 1
      %s16 = ssub.s32 %s10, 2
      %s17 = sadd.s32 %s10, 1
      %s18 = ssub.s32 %s10, %s17
      %p19 = scmp.eq.s32.totalorder %s18, 0
      %s21 = sadd.s32 %s20, 1
      %s22 = scalar_select %p19, %s20, %s21
      %p25 = pneg %p19
      %p26 = scmp.eq.s32.totalorder %s10, 1
      %p27 = por %p25, %p26
      %p28 = scmp.ne.s32.totalorder %s20, %s23
      %p29 = scmp.eq.s32.totalorder %s10, 0
      %p30 = por %p28, %p29
      %p31 = scmp.ne.s32.totalorder %s20, %s23
      %p32 = scmp.eq.s32.totalorder %s15, 1
      %p33 = por %p31, %p32
      %p34 = scmp.ne.s32.totalorder %s23, %s24
      %p35 = scmp.eq.s32.totalorder %s15, 0
      %p36 = por %p34, %p35
      %p37 = scmp.ne.s32.totalorder %s23, %s24
      %p38 = scmp.eq.s32.totalorder %s16, 1
      %p39 = por %p37, %p38
      %p41 = scmp.ne.s32.totalorder %s24, %s40
      %p42 = scmp.eq.s32.totalorder %s16, 0
      %p43 = por %p41, %p42
      %s45 = sadd.s32 %s44, 1
      %p48 = scmp.eq.s32.totalorder %s10, 1
      %p49 = scmp.ne.s32.totalorder %s44, %s46
      %p50 = scmp.eq.s32.totalorder %s10, 0
      %p51 = por %p49, %p50
      %p52 = scmp.ne.s32.totalorder %s44, %s46
      %p53 = scmp.eq.s32.totalorder %s15, 1
      %p54 = por %p52, %p53
      %p55 = scmp.ne.s32.totalorder %s46, %s47
      %p56 = scmp.eq.s32.totalorder %s15, 0
      %p57 = por %p55, %p56
      %p58 = scmp.ne.s32.totalorder %s46, %s47
      %p59 = scmp.eq.s32.totalorder %s16, 1
      %p60 = por %p58, %p59
      %p62 = scmp.ne.s32.totalorder %s47, %s61
      %p63 = scmp.eq.s32.totalorder %s16, 0
      %p64 = por %p62, %p63
      %s66 = sadd.s32 %s65, 1
      %p69 = scmp.eq.s32.totalorder %s10, 1
      %p70 = scmp.ne.s32.totalorder %s65, %s67
      %p71 = scmp.eq.s32.totalorder %s10, 0
      %p72 = por %p70, %p71
      %p73 = scmp.ne.s32.totalorder %s65, %s67
      %p74 = scmp.eq.s32.totalorder %s15, 1
      %p75 = por %p73, %p74
      %p76 = scmp.ne.s32.totalorder %s67, %s68
      %p77 = scmp.eq.s32.totalorder %s15, 0
      %p78 = por %p76, %p77
      %p79 = scmp.ne.s32.totalorder %s67, %s68
      %p80 = scmp.eq.s32.totalorder %s16, 1
      %p81 = por %p79, %p80
      %p83 = scmp.ne.s32.totalorder %s68, %s82
      %p84 = scmp.eq.s32.totalorder %s16, 0
      %p85 = por %p83, %p84
      %s86 = ssub.s32 %s10, %s17
      %p87 = scmp.eq.s32.totalorder %s86, 0
      %s89 = sadd.s32 %s88, 1
      %s90 = scalar_select %p87, %s88, %s89
      %p93 = pneg %p87
      %p94 = scmp.eq.s32.totalorder %s10, 1
      %p95 = por %p93, %p94
      %p96 = scmp.ne.s32.totalorder %s88, %s91
      %p97 = scmp.eq.s32.totalorder %s10, 0
      %p98 = por %p96, %p97
      %p99 = scmp.ne.s32.totalorder %s88, %s91
      %p100 = scmp.eq.s32.totalorder %s15, 1
      %p101 = por %p99, %p100
      %p102 = scmp.ne.s32.totalorder %s91, %s92
      %p103 = scmp.eq.s32.totalorder %s15, 0
      %p104 = por %p102, %p103
      %p105 = scmp.ne.s32.totalorder %s91, %s92
      %p106 = scmp.eq.s32.totalorder %s16, 1
      %p107 = por %p105, %p106
      %p109 = scmp.ne.s32.totalorder %s92, %s108
      %p110 = scmp.eq.s32.totalorder %s16, 0
      %p111 = por %p109, %p110
      %p112 = scmp.le.s32.totalorder 1, %s10
      %p113 = scmp.lt.s32.totalorder %s10, 3
      %p114 = pnand %p112, %p113
      %p115 = pneg %p114
      // Predicated region
      $region9: #{actor_forward.1} parent=5 // pred_check
        _
      $region10: #{actor_forward.1} parent=5 // pred_check_branch
        %117 = sbr.rel (%p114) target = $region12
      $region11: #{actor_forward.1} parent=5 // pred_region
        %s118 = ssub.s32 %s10, 1
        // Predicated region
        $region13: #{actor_forward.1} parent=11 // pred_check
          %p119 = pneg %p57
        $region14: #{actor_forward.1} parent=11 // pred_check_branch
          %121 = sbr.rel (%p119) target = $region16
        $region15: #{actor_forward.1} parent=11 // pred_region
          _
        $region16: #{actor_forward.1} parent=11 // pred_fallthru
          _
        // Predicated region
        $region17: #{actor_forward.1} parent=11 // pred_check
          %p122 = pneg %p78
        $region18: #{actor_forward.1} parent=11 // pred_check_branch
          %124 = sbr.rel (%p122) target = $region20
        $region19: #{actor_forward.1} parent=11 // pred_region
          _
        $region20: #{actor_forward.1} parent=11 // pred_fallthru
          _
      $region12: #{actor_forward.1} parent=5 // pred_fallthru
        _
      %p125 = scmp.lt.s32.totalorder %s10, 2
      // Predicated region
      $region21: #{actor_forward.1} parent=5 // pred_check
        %p126 = pneg %p125
      $region22: #{actor_forward.1} parent=5 // pred_check_branch
        %128 = sbr.rel (%p126) target = $region24
      $region23: #{actor_forward.1} parent=5 // pred_region
        // Predicated region
        $region25: #{actor_forward.1} parent=23 // pred_check
          %p129 = pneg %p30
        $region26: #{actor_forward.1} parent=23 // pred_check_branch
          %131 = sbr.rel (%p129) target = $region28
        $region27: #{actor_forward.1} parent=23 // pred_region
          %s132 = smul.u32 2, %s10
          %s133 = ssub.s32 3, %s132
          %p134 = scmp.lt.s32.totalorder %s133, 2
          %s135 = scalar_select %p134, %s133, 2
          %s136 = smul.u32 128, %s135
          %s137 = smul.u32 %s136, 16
          %p138 = scmp.lt.s32.totalorder %s132, 2
          %s139 = scalar_select %p138, %s132, 2
          %s140 = smul.addr %s139, 16
          %s141 = smul.addr %s140, 8
          %s142 = scalar_lea.vmem %s0, %s141
          %s143 = smul.u32 2, %s10
          %s144 = ssub.s32 3, %s143
          %p145 = scmp.lt.s32.totalorder %s144, 2
          %s146 = scalar_select %p145, %s144, 2
          %s147 = smul.u32 128, %s146
          %s148 = smul.u32 %s147, 16
        $region28: #{actor_forward.1} parent=23 // pred_fallthru
          _
      $region24: #{actor_forward.1} parent=5 // pred_fallthru
        _
      %p149 = scmp.le.s32.totalorder 1, %s10
      %p150 = scmp.lt.s32.totalorder %s10, 3
      %p151 = pnand %p149, %p150
      %p152 = pneg %p151
      // Predicated region
      $region29: #{actor_forward.1} parent=5 // pred_check
        _
      $region30: #{actor_forward.1} parent=5 // pred_check_branch
        %154 = sbr.rel (%p151) target = $region32
      $region31: #{actor_forward.1} parent=5 // pred_region
        %s155 = ssub.s32 %s10, 1
        %s156 = smul.u32 2, %s15
        %s157 = ssub.s32 3, %s156
        %p158 = scmp.lt.s32.totalorder %s157, 2
        %s159 = scalar_select %p158, %s157, 2
        %s160 = smul.u32 128, %s159
        %s161 = smul.u32 %s160, 16
        %p162 = scmp.lt.s32.totalorder %s156, 2
        %s163 = scalar_select %p162, %s156, 2
        %s164 = smul.addr %s163, 16
        %s165 = smul.addr %s164, 8
        %s166 = scalar_lea.vmem %s0, %s165
        %p167 = pneg %p36
        %p168 = pneg %p33
        %p169 = pneg %p57
        %p170 = pneg %p54
        %p171 = pneg %p78
        %p172 = pneg %p75
        %p173 = pneg %p104
        %p174 = pneg %p101
        %s175 = sand.u32 %s91, 1
        %s176 = sand.u32 %s91, 1
        %s177 = smul.addr %s176, 16
        %s178 = scalar_lea.vmem [#allocation3], %s177
        %s179 = smul.u32 2, %s15
        %s180 = ssub.s32 3, %s179
        %p181 = scmp.lt.s32.totalorder %s180, 2
        %s182 = scalar_select %p181, %s180, 2
        %s183 = smul.u32 128, %s182
        %s184 = smul.u32 %s183, 16
        %p185 = scmp.lt.s32.totalorder %s179, 2
        %s186 = scalar_select %p185, %s179, 2
        %s187 = smul.addr %s186, 16
        %s188 = smul.addr %s187, 8
        %s189 = scalar_lea.vmem %s0, %s188
        %s190 = smul.u32 2, %s15
        %s191 = ssub.s32 3, %s190
        %p192 = scmp.lt.s32.totalorder %s191, 2
        %s193 = scalar_select %p192, %s191, 2
        %s194 = smul.u32 128, %s193
        %s195 = smul.u32 %s194, 16
        %s196 = smul.u32 2, %s15
        %s197 = ssub.s32 3, %s196
        %p198 = scmp.lt.s32.totalorder %s197, 2
        %s199 = scalar_select %p198, %s197, 2
        %s200 = smul.u32 128, %s199
        %v202 = vld [vmem:[%s189] sm:$0xff]
        %v203 = vld [vmem:[%s189 + $0x8] sm:$0xff]
        %v204 = vld [vmem:[%s189 + $0x10] sm:$0xff]
        %v205 = vld [vmem:[%s189 + $0x18] sm:$0xff]
        %v206 = vld [vmem:[%s189 + $0x20] sm:$0xff]
        %v207 = vld [vmem:[%s189 + $0x28] sm:$0xff]
        %v208 = vld [vmem:[%s189 + $0x30] sm:$0xff]
        %v209 = vld [vmem:[%s189 + $0x38] sm:$0xff]
        %v210 = vld [vmem:[%s189 + $0x40] sm:$0xff]
        %v211 = vld [vmem:[%s189 + $0x48] sm:$0xff]
        %v212 = vld [vmem:[%s189 + $0x50] sm:$0xff]
        %v213 = vld [vmem:[%s189 + $0x58] sm:$0xff]
        %v214 = vld [vmem:[%s189 + $0x60] sm:$0xff]
        %v215 = vld [vmem:[%s189 + $0x68] sm:$0xff]
        %v216 = vld [vmem:[%s189 + $0x70] sm:$0xff]
        %v217 = vld [vmem:[%s189 + $0x78] sm:$0xff]
        %v218 = vld [vmem:[%s189 + $0x80] sm:$0xff]
        %v219 = vld [vmem:[%s189 + $0x88] sm:$0xff]
        %v220 = vld [vmem:[%s189 + $0x90] sm:$0xff]
        %v221 = vld [vmem:[%s189 + $0x98] sm:$0xff]
        %v222 = vld [vmem:[%s189 + $0xa0] sm:$0xff]
        %v223 = vld [vmem:[%s189 + $0xa8] sm:$0xff]
        %v224 = vld [vmem:[%s189 + $0xb0] sm:$0xff]
        %v225 = vld [vmem:[%s189 + $0xb8] sm:$0xff]
        %v226 = vld [vmem:[%s189 + $0xc0] sm:$0xff]
        %v227 = vld [vmem:[%s189 + $0xc8] sm:$0xff]
        %v228 = vld [vmem:[%s189 + $0xd0] sm:$0xff]
        %v229 = vld [vmem:[%s189 + $0xd8] sm:$0xff]
        %v230 = vld [vmem:[%s189 + $0xe0] sm:$0xff]
        %v231 = vld [vmem:[%s189 + $0xe8] sm:$0xff]
        %v232 = vld [vmem:[%s189 + $0xf0] sm:$0xff]
        %v233 = vld [vmem:[%s189 + $0xf8] sm:$0xff]
        %v234 = vpack.c.bf16 %v218, %v202
        %v235 = vpack.c.bf16 %v219, %v203
        %v236 = vpack.c.bf16 %v220, %v204
        %v237 = vpack.c.bf16 %v221, %v205
        %v238 = vpack.c.bf16 %v222, %v206
        %v239 = vpack.c.bf16 %v223, %v207
        %v240 = vpack.c.bf16 %v224, %v208
        %v241 = vpack.c.bf16 %v225, %v209
        %v242 = vpack.c.bf16 %v226, %v210
        %v243 = vpack.c.bf16 %v227, %v211
        %v244 = vpack.c.bf16 %v228, %v212
        %v245 = vpack.c.bf16 %v229, %v213
        %v246 = vpack.c.bf16 %v230, %v214
        %v247 = vpack.c.bf16 %v231, %v215
        %v248 = vpack.c.bf16 %v232, %v216
        %v249 = vpack.c.bf16 %v233, %v217
        %v250 = vld [vmem:[%s1] sm:$0xf]
        %v251 = vld [vmem:[%s1 + $0x4] sm:$0xf]
        %v252 = vld [vmem:[%s1 + $0x8] sm:$0xf]
        %v253 = vld [vmem:[%s1 + $0xc] sm:$0xf]
        %v254 = vld [vmem:[%s1 + $0x10] sm:$0xf]
        %v255 = vld [vmem:[%s1 + $0x14] sm:$0xf]
        %v256 = vld [vmem:[%s1 + $0x18] sm:$0xf]
        %v257 = vld [vmem:[%s1 + $0x1c] sm:$0xf]
        %v258 = vld [vmem:[%s1 + $0x20] sm:$0xf]
        %v259 = vld [vmem:[%s1 + $0x24] sm:$0xf]
        %v260 = vld [vmem:[%s1 + $0x28] sm:$0xf]
        %v261 = vld [vmem:[%s1 + $0x2c] sm:$0xf]
        %v262 = vld [vmem:[%s1 + $0x30] sm:$0xf]
        %v263 = vld [vmem:[%s1 + $0x34] sm:$0xf]
        %v264 = vld [vmem:[%s1 + $0x38] sm:$0xf]
        %v265 = vld [vmem:[%s1 + $0x3c] sm:$0xf]
        %v266 = vld [vmem:[%s1 + $0x40] sm:$0xf]
        %v267 = vld [vmem:[%s1 + $0x44] sm:$0xf]
        %v268 = vld [vmem:[%s1 + $0x48] sm:$0xf]
        %v269 = vld [vmem:[%s1 + $0x4c] sm:$0xf]
        %v270 = vld [vmem:[%s1 + $0x50] sm:$0xf]
        %v271 = vld [vmem:[%s1 + $0x54] sm:$0xf]
        %v272 = vld [vmem:[%s1 + $0x58] sm:$0xf]
        %v273 = vld [vmem:[%s1 + $0x5c] sm:$0xf]
        %v274 = vld [vmem:[%s1 + $0x60] sm:$0xf]
        %v275 = vld [vmem:[%s1 + $0x64] sm:$0xf]
        %v276 = vld [vmem:[%s1 + $0x68] sm:$0xf]
        %v277 = vld [vmem:[%s1 + $0x6c] sm:$0xf]
        %v278 = vld [vmem:[%s1 + $0x70] sm:$0xf]
        %v279 = vld [vmem:[%s1 + $0x74] sm:$0xf]
        %v280 = vld [vmem:[%s1 + $0x78] sm:$0xf]
        %v281 = vld [vmem:[%s1 + $0x7c] sm:$0xf]
        %v282 = vld [vmem:[%s1 + $0x80] sm:$0xf]
        %v283 = vld [vmem:[%s1 + $0x84] sm:$0xf]
        %v284 = vld [vmem:[%s1 + $0x88] sm:$0xf]
        %v285 = vld [vmem:[%s1 + $0x8c] sm:$0xf]
        %v286 = vld [vmem:[%s1 + $0x90] sm:$0xf]
        %v287 = vld [vmem:[%s1 + $0x94] sm:$0xf]
        %v288 = vld [vmem:[%s1 + $0x98] sm:$0xf]
        %v289 = vld [vmem:[%s1 + $0x9c] sm:$0xf]
        %v290 = vld [vmem:[%s1 + $0xa0] sm:$0xf]
        %v291 = vld [vmem:[%s1 + $0xa4] sm:$0xf]
        %v292 = vld [vmem:[%s1 + $0xa8] sm:$0xf]
        %v293 = vld [vmem:[%s1 + $0xac] sm:$0xf]
        %v294 = vld [vmem:[%s1 + $0xb0] sm:$0xf]
        %v295 = vld [vmem:[%s1 + $0xb4] sm:$0xf]
        %v296 = vld [vmem:[%s1 + $0xb8] sm:$0xf]
        %v297 = vld [vmem:[%s1 + $0xbc] sm:$0xf]
        %v298 = vld [vmem:[%s1 + $0xc0] sm:$0xf]
        %v299 = vld [vmem:[%s1 + $0xc4] sm:$0xf]
        %v300 = vld [vmem:[%s1 + $0xc8] sm:$0xf]
        %v301 = vld [vmem:[%s1 + $0xcc] sm:$0xf]
        %v302 = vld [vmem:[%s1 + $0xd0] sm:$0xf]
        %v303 = vld [vmem:[%s1 + $0xd4] sm:$0xf]
        %v304 = vld [vmem:[%s1 + $0xd8] sm:$0xf]
        %v305 = vld [vmem:[%s1 + $0xdc] sm:$0xf]
        %v306 = vld [vmem:[%s1 + $0xe0] sm:$0xf]
        %v307 = vld [vmem:[%s1 + $0xe4] sm:$0xf]
        %v308 = vld [vmem:[%s1 + $0xe8] sm:$0xf]
        %v309 = vld [vmem:[%s1 + $0xec] sm:$0xf]
        %v310 = vld [vmem:[%s1 + $0xf0] sm:$0xf]
        %v311 = vld [vmem:[%s1 + $0xf4] sm:$0xf]
        %v312 = vld [vmem:[%s1 + $0xf8] sm:$0xf]
        %v313 = vld [vmem:[%s1 + $0xfc] sm:$0xf]
        %v314 = vld [vmem:[%s1 + $0x100] sm:$0xf]
        %v315 = vld [vmem:[%s1 + $0x104] sm:$0xf]
        %v316 = vld [vmem:[%s1 + $0x108] sm:$0xf]
        %v317 = vld [vmem:[%s1 + $0x10c] sm:$0xf]
        %v318 = vld [vmem:[%s1 + $0x110] sm:$0xf]
        %v319 = vld [vmem:[%s1 + $0x114] sm:$0xf]
        %v320 = vld [vmem:[%s1 + $0x118] sm:$0xf]
        %v321 = vld [vmem:[%s1 + $0x11c] sm:$0xf]
        %v322 = vld [vmem:[%s1 + $0x120] sm:$0xf]
        %v323 = vld [vmem:[%s1 + $0x124] sm:$0xf]
        %v324 = vld [vmem:[%s1 + $0x128] sm:$0xf]
        %v325 = vld [vmem:[%s1 + $0x12c] sm:$0xf]
        %v326 = vld [vmem:[%s1 + $0x130] sm:$0xf]
        %v327 = vld [vmem:[%s1 + $0x134] sm:$0xf]
        %v328 = vld [vmem:[%s1 + $0x138] sm:$0xf]
        %v329 = vld [vmem:[%s1 + $0x13c] sm:$0xf]
        %v330 = vld [vmem:[%s1 + $0x140] sm:$0xf]
        %v331 = vld [vmem:[%s1 + $0x144] sm:$0xf]
        %v332 = vld [vmem:[%s1 + $0x148] sm:$0xf]
        %v333 = vld [vmem:[%s1 + $0x14c] sm:$0xf]
        %v334 = vld [vmem:[%s1 + $0x150] sm:$0xf]
        %v335 = vld [vmem:[%s1 + $0x154] sm:$0xf]
        %v336 = vld [vmem:[%s1 + $0x158] sm:$0xf]
        %v337 = vld [vmem:[%s1 + $0x15c] sm:$0xf]
        %v338 = vld [vmem:[%s1 + $0x160] sm:$0xf]
        %v339 = vld [vmem:[%s1 + $0x164] sm:$0xf]
        %v340 = vld [vmem:[%s1 + $0x168] sm:$0xf]
        %v341 = vld [vmem:[%s1 + $0x16c] sm:$0xf]
        %v342 = vld [vmem:[%s1 + $0x170] sm:$0xf]
        %v343 = vld [vmem:[%s1 + $0x174] sm:$0xf]
        %v344 = vld [vmem:[%s1 + $0x178] sm:$0xf]
        %v345 = vld [vmem:[%s1 + $0x17c] sm:$0xf]
        %v346 = vld [vmem:[%s1 + $0x180] sm:$0xf]
        %v347 = vld [vmem:[%s1 + $0x184] sm:$0xf]
        %v348 = vld [vmem:[%s1 + $0x188] sm:$0xf]
        %v349 = vld [vmem:[%s1 + $0x18c] sm:$0xf]
        %v350 = vld [vmem:[%s1 + $0x190] sm:$0xf]
        %v351 = vld [vmem:[%s1 + $0x194] sm:$0xf]
        %v352 = vld [vmem:[%s1 + $0x198] sm:$0xf]
        %v353 = vld [vmem:[%s1 + $0x19c] sm:$0xf]
        %v354 = vld [vmem:[%s1 + $0x1a0] sm:$0xf]
        %v355 = vld [vmem:[%s1 + $0x1a4] sm:$0xf]
        %v356 = vld [vmem:[%s1 + $0x1a8] sm:$0xf]
        %v357 = vld [vmem:[%s1 + $0x1ac] sm:$0xf]
        %v358 = vld [vmem:[%s1 + $0x1b0] sm:$0xf]
        %v359 = vld [vmem:[%s1 + $0x1b4] sm:$0xf]
        %v360 = vld [vmem:[%s1 + $0x1b8] sm:$0xf]
        %v361 = vld [vmem:[%s1 + $0x1bc] sm:$0xf]
        %v362 = vld [vmem:[%s1 + $0x1c0] sm:$0xf]
        %v363 = vld [vmem:[%s1 + $0x1c4] sm:$0xf]
        %v364 = vld [vmem:[%s1 + $0x1c8] sm:$0xf]
        %v365 = vld [vmem:[%s1 + $0x1cc] sm:$0xf]
        %v366 = vld [vmem:[%s1 + $0x1d0] sm:$0xf]
        %v367 = vld [vmem:[%s1 + $0x1d4] sm:$0xf]
        %v368 = vld [vmem:[%s1 + $0x1d8] sm:$0xf]
        %v369 = vld [vmem:[%s1 + $0x1dc] sm:$0xf]
        %v370 = vld [vmem:[%s1 + $0x1e0] sm:$0xf]
        %v371 = vld [vmem:[%s1 + $0x1e4] sm:$0xf]
        %v372 = vld [vmem:[%s1 + $0x1e8] sm:$0xf]
        %v373 = vld [vmem:[%s1 + $0x1ec] sm:$0xf]
        %v374 = vld [vmem:[%s1 + $0x1f0] sm:$0xf]
        %v375 = vld [vmem:[%s1 + $0x1f4] sm:$0xf]
        %v376 = vld [vmem:[%s1 + $0x1f8] sm:$0xf]
        %v377 = vld [vmem:[%s1 + $0x1fc] sm:$0xf]
        %v378 = vld [vmem:[%s1 + $0x200] sm:$0xf]
        %v379 = vld [vmem:[%s1 + $0x204] sm:$0xf]
        %v380 = vld [vmem:[%s1 + $0x208] sm:$0xf]
        %v381 = vld [vmem:[%s1 + $0x20c] sm:$0xf]
        %v382 = vld [vmem:[%s1 + $0x210] sm:$0xf]
        %v383 = vld [vmem:[%s1 + $0x214] sm:$0xf]
        %v384 = vld [vmem:[%s1 + $0x218] sm:$0xf]
        %v385 = vld [vmem:[%s1 + $0x21c] sm:$0xf]
        %v386 = vld [vmem:[%s1 + $0x220] sm:$0xf]
        %v387 = vld [vmem:[%s1 + $0x224] sm:$0xf]
        %v388 = vld [vmem:[%s1 + $0x228] sm:$0xf]
        %v389 = vld [vmem:[%s1 + $0x22c] sm:$0xf]
        %v390 = vld [vmem:[%s1 + $0x230] sm:$0xf]
        %v391 = vld [vmem:[%s1 + $0x234] sm:$0xf]
        %v392 = vld [vmem:[%s1 + $0x238] sm:$0xf]
        %v393 = vld [vmem:[%s1 + $0x23c] sm:$0xf]
        %v394 = vld [vmem:[%s1 + $0x240] sm:$0xf]
        %v395 = vld [vmem:[%s1 + $0x244] sm:$0xf]
        %v396 = vld [vmem:[%s1 + $0x248] sm:$0xf]
        %v397 = vld [vmem:[%s1 + $0x24c] sm:$0xf]
        %v398 = vld [vmem:[%s1 + $0x250] sm:$0xf]
        %v399 = vld [vmem:[%s1 + $0x254] sm:$0xf]
        %v400 = vld [vmem:[%s1 + $0x258] sm:$0xf]
        %v401 = vld [vmem:[%s1 + $0x25c] sm:$0xf]
        %v402 = vld [vmem:[%s1 + $0x260] sm:$0xf]
        %v403 = vld [vmem:[%s1 + $0x264] sm:$0xf]
        %v404 = vld [vmem:[%s1 + $0x268] sm:$0xf]
        %v405 = vld [vmem:[%s1 + $0x26c] sm:$0xf]
        %v406 = vld [vmem:[%s1 + $0x270] sm:$0xf]
        %v407 = vld [vmem:[%s1 + $0x274] sm:$0xf]
        %v408 = vld [vmem:[%s1 + $0x278] sm:$0xf]
        %v409 = vld [vmem:[%s1 + $0x27c] sm:$0xf]
        %v410 = vld [vmem:[%s1 + $0x280] sm:$0xf]
        %v411 = vld [vmem:[%s1 + $0x284] sm:$0xf]
        %v412 = vld [vmem:[%s1 + $0x288] sm:$0xf]
        %v413 = vld [vmem:[%s1 + $0x28c] sm:$0xf]
        %v414 = vld [vmem:[%s1 + $0x290] sm:$0xf]
        %v415 = vld [vmem:[%s1 + $0x294] sm:$0xf]
        %v416 = vld [vmem:[%s1 + $0x298] sm:$0xf]
        %v417 = vld [vmem:[%s1 + $0x29c] sm:$0xf]
        %v418 = vld [vmem:[%s1 + $0x2a0] sm:$0xf]
        %v419 = vld [vmem:[%s1 + $0x2a4] sm:$0xf]
        %v420 = vld [vmem:[%s1 + $0x2a8] sm:$0xf]
        %v421 = vld [vmem:[%s1 + $0x2ac] sm:$0xf]
        %v422 = vld [vmem:[%s1 + $0x2b0] sm:$0xf]
        %v423 = vld [vmem:[%s1 + $0x2b4] sm:$0xf]
        %v424 = vld [vmem:[%s1 + $0x2b8] sm:$0xf]
        %v425 = vld [vmem:[%s1 + $0x2bc] sm:$0xf]
        %v426 = vld [vmem:[%s1 + $0x2c0] sm:$0xf]
        %v427 = vld [vmem:[%s1 + $0x2c4] sm:$0xf]
        %v428 = vld [vmem:[%s1 + $0x2c8] sm:$0xf]
        %v429 = vld [vmem:[%s1 + $0x2cc] sm:$0xf]
        %v430 = vld [vmem:[%s1 + $0x2d0] sm:$0xf]
        %v431 = vld [vmem:[%s1 + $0x2d4] sm:$0xf]
        %v432 = vld [vmem:[%s1 + $0x2d8] sm:$0xf]
        %v433 = vld [vmem:[%s1 + $0x2dc] sm:$0xf]
        %v434 = vld [vmem:[%s1 + $0x2e0] sm:$0xf]
        %v435 = vld [vmem:[%s1 + $0x2e4] sm:$0xf]
        %v436 = vld [vmem:[%s1 + $0x2e8] sm:$0xf]
        %v437 = vld [vmem:[%s1 + $0x2ec] sm:$0xf]
        %v438 = vld [vmem:[%s1 + $0x2f0] sm:$0xf]
        %v439 = vld [vmem:[%s1 + $0x2f4] sm:$0xf]
        %v440 = vld [vmem:[%s1 + $0x2f8] sm:$0xf]
        %v441 = vld [vmem:[%s1 + $0x2fc] sm:$0xf]
        %v442 = vld [vmem:[%s1 + $0x300] sm:$0xf]
        %v443 = vld [vmem:[%s1 + $0x304] sm:$0xf]
        %v444 = vld [vmem:[%s1 + $0x308] sm:$0xf]
        %v445 = vld [vmem:[%s1 + $0x30c] sm:$0xf]
        %v446 = vld [vmem:[%s1 + $0x310] sm:$0xf]
        %v447 = vld [vmem:[%s1 + $0x314] sm:$0xf]
        %v448 = vld [vmem:[%s1 + $0x318] sm:$0xf]
        %v449 = vld [vmem:[%s1 + $0x31c] sm:$0xf]
        %v450 = vld [vmem:[%s1 + $0x320] sm:$0xf]
        %v451 = vld [vmem:[%s1 + $0x324] sm:$0xf]
        %v452 = vld [vmem:[%s1 + $0x328] sm:$0xf]
        %v453 = vld [vmem:[%s1 + $0x32c] sm:$0xf]
        %v454 = vld [vmem:[%s1 + $0x330] sm:$0xf]
        %v455 = vld [vmem:[%s1 + $0x334] sm:$0xf]
        %v456 = vld [vmem:[%s1 + $0x338] sm:$0xf]
        %v457 = vld [vmem:[%s1 + $0x33c] sm:$0xf]
        %v458 = vld [vmem:[%s1 + $0x340] sm:$0xf]
        %v459 = vld [vmem:[%s1 + $0x344] sm:$0xf]
        %v460 = vld [vmem:[%s1 + $0x348] sm:$0xf]
        %v461 = vld [vmem:[%s1 + $0x34c] sm:$0xf]
        %v462 = vld [vmem:[%s1 + $0x350] sm:$0xf]
        %v463 = vld [vmem:[%s1 + $0x354] sm:$0xf]
        %v464 = vld [vmem:[%s1 + $0x358] sm:$0xf]
        %v465 = vld [vmem:[%s1 + $0x35c] sm:$0xf]
        %v466 = vld [vmem:[%s1 + $0x360] sm:$0xf]
        %v467 = vld [vmem:[%s1 + $0x364] sm:$0xf]
        %v468 = vld [vmem:[%s1 + $0x368] sm:$0xf]
        %v469 = vld [vmem:[%s1 + $0x36c] sm:$0xf]
        %v470 = vld [vmem:[%s1 + $0x370] sm:$0xf]
        %v471 = vld [vmem:[%s1 + $0x374] sm:$0xf]
        %v472 = vld [vmem:[%s1 + $0x378] sm:$0xf]
        %v473 = vld [vmem:[%s1 + $0x37c] sm:$0xf]
        %v474 = vld [vmem:[%s1 + $0x380] sm:$0xf]
        %v475 = vld [vmem:[%s1 + $0x384] sm:$0xf]
        %v476 = vld [vmem:[%s1 + $0x388] sm:$0xf]
        %v477 = vld [vmem:[%s1 + $0x38c] sm:$0xf]
        %v478 = vld [vmem:[%s1 + $0x390] sm:$0xf]
        %v479 = vld [vmem:[%s1 + $0x394] sm:$0xf]
        %v480 = vld [vmem:[%s1 + $0x398] sm:$0xf]
        %v481 = vld [vmem:[%s1 + $0x39c] sm:$0xf]
        %v482 = vld [vmem:[%s1 + $0x3a0] sm:$0xf]
        %v483 = vld [vmem:[%s1 + $0x3a4] sm:$0xf]
        %v484 = vld [vmem:[%s1 + $0x3a8] sm:$0xf]
        %v485 = vld [vmem:[%s1 + $0x3ac] sm:$0xf]
        %v486 = vld [vmem:[%s1 + $0x3b0] sm:$0xf]
        %v487 = vld [vmem:[%s1 + $0x3b4] sm:$0xf]
        %v488 = vld [vmem:[%s1 + $0x3b8] sm:$0xf]
        %v489 = vld [vmem:[%s1 + $0x3bc] sm:$0xf]
        %v490 = vld [vmem:[%s1 + $0x3c0] sm:$0xf]
        %v491 = vld [vmem:[%s1 + $0x3c4] sm:$0xf]
        %v492 = vld [vmem:[%s1 + $0x3c8] sm:$0xf]
        %v493 = vld [vmem:[%s1 + $0x3cc] sm:$0xf]
        %v494 = vld [vmem:[%s1 + $0x3d0] sm:$0xf]
        %v495 = vld [vmem:[%s1 + $0x3d4] sm:$0xf]
        %v496 = vld [vmem:[%s1 + $0x3d8] sm:$0xf]
        %v497 = vld [vmem:[%s1 + $0x3dc] sm:$0xf]
        %v498 = vld [vmem:[%s1 + $0x3e0] sm:$0xf]
        %v499 = vld [vmem:[%s1 + $0x3e4] sm:$0xf]
        %v500 = vld [vmem:[%s1 + $0x3e8] sm:$0xf]
        %v501 = vld [vmem:[%s1 + $0x3ec] sm:$0xf]
        %v502 = vld [vmem:[%s1 + $0x3f0] sm:$0xf]
        %v503 = vld [vmem:[%s1 + $0x3f4] sm:$0xf]
        %v504 = vld [vmem:[%s1 + $0x3f8] sm:$0xf]
        %v505 = vld [vmem:[%s1 + $0x3fc] sm:$0xf]
        %s506 = sld [smem:[#allocation2]]
        %v507 = vstv %s506
        %v764 = vunpack.c.l.b16 %v250
        %v765 = vunpack.c.l.b16 %v251
        %v766 = vunpack.c.l.b16 %v252
        %v767 = vunpack.c.l.b16 %v253
        %v768 = vunpack.c.l.b16 %v254
        %v769 = vunpack.c.l.b16 %v255
        %v770 = vunpack.c.l.b16 %v256
        %v771 = vunpack.c.l.b16 %v257
        %v772 = vunpack.c.l.b16 %v258
        %v773 = vunpack.c.l.b16 %v259
        %v774 = vunpack.c.l.b16 %v260
        %v775 = vunpack.c.l.b16 %v261
        %v776 = vunpack.c.l.b16 %v262
        %v777 = vunpack.c.l.b16 %v263
        %v778 = vunpack.c.l.b16 %v264
        %v779 = vunpack.c.l.b16 %v265
        %v780 = vunpack.c.l.b16 %v266
        %v781 = vunpack.c.l.b16 %v267
        %v782 = vunpack.c.l.b16 %v268
        %v783 = vunpack.c.l.b16 %v269
        %v784 = vunpack.c.l.b16 %v270
        %v785 = vunpack.c.l.b16 %v271
        %v786 = vunpack.c.l.b16 %v272
        %v787 = vunpack.c.l.b16 %v273
        %v788 = vunpack.c.l.b16 %v274
        %v789 = vunpack.c.l.b16 %v275
        %v790 = vunpack.c.l.b16 %v276
        %v791 = vunpack.c.l.b16 %v277
        %v792 = vunpack.c.l.b16 %v278
        %v793 = vunpack.c.l.b16 %v279
        %v794 = vunpack.c.l.b16 %v280
        %v795 = vunpack.c.l.b16 %v281
        %v796 = vunpack.c.l.b16 %v282
        %v797 = vunpack.c.l.b16 %v283
        %v798 = vunpack.c.l.b16 %v284
        %v799 = vunpack.c.l.b16 %v285
        %v800 = vunpack.c.l.b16 %v286
        %v801 = vunpack.c.l.b16 %v287
        %v802 = vunpack.c.l.b16 %v288
        %v803 = vunpack.c.l.b16 %v289
        %v804 = vunpack.c.l.b16 %v290
        %v805 = vunpack.c.l.b16 %v291
        %v806 = vunpack.c.l.b16 %v292
        %v807 = vunpack.c.l.b16 %v293
        %v808 = vunpack.c.l.b16 %v294
        %v809 = vunpack.c.l.b16 %v295
        %v810 = vunpack.c.l.b16 %v296
        %v811 = vunpack.c.l.b16 %v297
        %v812 = vunpack.c.l.b16 %v298
        %v813 = vunpack.c.l.b16 %v299
        %v814 = vunpack.c.l.b16 %v300
        %v815 = vunpack.c.l.b16 %v301
        %v816 = vunpack.c.l.b16 %v302
        %v817 = vunpack.c.l.b16 %v303
        %v818 = vunpack.c.l.b16 %v304
        %v819 = vunpack.c.l.b16 %v305
        %v820 = vunpack.c.l.b16 %v306
        %v821 = vunpack.c.l.b16 %v307
        %v822 = vunpack.c.l.b16 %v308
        %v823 = vunpack.c.l.b16 %v309
        %v824 = vunpack.c.l.b16 %v310
        %v825 = vunpack.c.l.b16 %v311
        %v826 = vunpack.c.l.b16 %v312
        %v827 = vunpack.c.l.b16 %v313
        %v828 = vunpack.c.l.b16 %v314
        %v829 = vunpack.c.l.b16 %v315
        %v830 = vunpack.c.l.b16 %v316
        %v831 = vunpack.c.l.b16 %v317
        %v832 = vunpack.c.l.b16 %v318
        %v833 = vunpack.c.l.b16 %v319
        %v834 = vunpack.c.l.b16 %v320
        %v835 = vunpack.c.l.b16 %v321
        %v836 = vunpack.c.l.b16 %v322
        %v837 = vunpack.c.l.b16 %v323
        %v838 = vunpack.c.l.b16 %v324
        %v839 = vunpack.c.l.b16 %v325
        %v840 = vunpack.c.l.b16 %v326
        %v841 = vunpack.c.l.b16 %v327
        %v842 = vunpack.c.l.b16 %v328
        %v843 = vunpack.c.l.b16 %v329
        %v844 = vunpack.c.l.b16 %v330
        %v845 = vunpack.c.l.b16 %v331
        %v846 = vunpack.c.l.b16 %v332
        %v847 = vunpack.c.l.b16 %v333
        %v848 = vunpack.c.l.b16 %v334
        %v849 = vunpack.c.l.b16 %v335
        %v850 = vunpack.c.l.b16 %v336
        %v851 = vunpack.c.l.b16 %v337
        %v852 = vunpack.c.l.b16 %v338
        %v853 = vunpack.c.l.b16 %v339
        %v854 = vunpack.c.l.b16 %v340
        %v855 = vunpack.c.l.b16 %v341
        %v856 = vunpack.c.l.b16 %v342
        %v857 = vunpack.c.l.b16 %v343
        %v858 = vunpack.c.l.b16 %v344
        %v859 = vunpack.c.l.b16 %v345
        %v860 = vunpack.c.l.b16 %v346
        %v861 = vunpack.c.l.b16 %v347
        %v862 = vunpack.c.l.b16 %v348
        %v863 = vunpack.c.l.b16 %v349
        %v864 = vunpack.c.l.b16 %v350
        %v865 = vunpack.c.l.b16 %v351
        %v866 = vunpack.c.l.b16 %v352
        %v867 = vunpack.c.l.b16 %v353
        %v868 = vunpack.c.l.b16 %v354
        %v869 = vunpack.c.l.b16 %v355
        %v870 = vunpack.c.l.b16 %v356
        %v871 = vunpack.c.l.b16 %v357
        %v872 = vunpack.c.l.b16 %v358
        %v873 = vunpack.c.l.b16 %v359
        %v874 = vunpack.c.l.b16 %v360
        %v875 = vunpack.c.l.b16 %v361
        %v876 = vunpack.c.l.b16 %v362
        %v877 = vunpack.c.l.b16 %v363
        %v878 = vunpack.c.l.b16 %v364
        %v879 = vunpack.c.l.b16 %v365
        %v880 = vunpack.c.l.b16 %v366
        %v881 = vunpack.c.l.b16 %v367
        %v882 = vunpack.c.l.b16 %v368
        %v883 = vunpack.c.l.b16 %v369
        %v884 = vunpack.c.l.b16 %v370
        %v885 = vunpack.c.l.b16 %v371
        %v886 = vunpack.c.l.b16 %v372
        %v887 = vunpack.c.l.b16 %v373
        %v888 = vunpack.c.l.b16 %v374
        %v889 = vunpack.c.l.b16 %v375
        %v890 = vunpack.c.l.b16 %v376
        %v891 = vunpack.c.l.b16 %v377
        %v892 = vunpack.c.l.b16 %v378
        %v893 = vunpack.c.l.b16 %v379
        %v894 = vunpack.c.l.b16 %v380
        %v895 = vunpack.c.l.b16 %v381
        %v896 = vunpack.c.l.b16 %v382
        %v897 = vunpack.c.l.b16 %v383
        %v898 = vunpack.c.l.b16 %v384
        %v899 = vunpack.c.l.b16 %v385
        %v900 = vunpack.c.l.b16 %v386
        %v901 = vunpack.c.l.b16 %v387
        %v902 = vunpack.c.l.b16 %v388
        %v903 = vunpack.c.l.b16 %v389
        %v904 = vunpack.c.l.b16 %v390
        %v905 = vunpack.c.l.b16 %v391
        %v906 = vunpack.c.l.b16 %v392
        %v907 = vunpack.c.l.b16 %v393
        %v908 = vunpack.c.l.b16 %v394
        %v909 = vunpack.c.l.b16 %v395
        %v910 = vunpack.c.l.b16 %v396
        %v911 = vunpack.c.l.b16 %v397
        %v912 = vunpack.c.l.b16 %v398
        %v913 = vunpack.c.l.b16 %v399
        %v914 = vunpack.c.l.b16 %v400
        %v915 = vunpack.c.l.b16 %v401
        %v916 = vunpack.c.l.b16 %v402
        %v917 = vunpack.c.l.b16 %v403
        %v918 = vunpack.c.l.b16 %v404
        %v919 = vunpack.c.l.b16 %v405
        %v920 = vunpack.c.l.b16 %v406
        %v921 = vunpack.c.l.b16 %v407
        %v922 = vunpack.c.l.b16 %v408
        %v923 = vunpack.c.l.b16 %v409
        %v924 = vunpack.c.l.b16 %v410
        %v925 = vunpack.c.l.b16 %v411
        %v926 = vunpack.c.l.b16 %v412
        %v927 = vunpack.c.l.b16 %v413
        %v928 = vunpack.c.l.b16 %v414
        %v929 = vunpack.c.l.b16 %v415
        %v930 = vunpack.c.l.b16 %v416
        %v931 = vunpack.c.l.b16 %v417
        %v932 = vunpack.c.l.b16 %v418
        %v933 = vunpack.c.l.b16 %v419
        %v934 = vunpack.c.l.b16 %v420
        %v935 = vunpack.c.l.b16 %v421
        %v936 = vunpack.c.l.b16 %v422
        %v937 = vunpack.c.l.b16 %v423
        %v938 = vunpack.c.l.b16 %v424
        %v939 = vunpack.c.l.b16 %v425
        %v940 = vunpack.c.l.b16 %v426
        %v941 = vunpack.c.l.b16 %v427
        %v942 = vunpack.c.l.b16 %v428
        %v943 = vunpack.c.l.b16 %v429
        %v944 = vunpack.c.l.b16 %v430
        %v945 = vunpack.c.l.b16 %v431
        %v946 = vunpack.c.l.b16 %v432
        %v947 = vunpack.c.l.b16 %v433
        %v948 = vunpack.c.l.b16 %v434
        %v949 = vunpack.c.l.b16 %v435
        %v950 = vunpack.c.l.b16 %v436
        %v951 = vunpack.c.l.b16 %v437
        %v952 = vunpack.c.l.b16 %v438
        %v953 = vunpack.c.l.b16 %v439
        %v954 = vunpack.c.l.b16 %v440
        %v955 = vunpack.c.l.b16 %v441
        %v956 = vunpack.c.l.b16 %v442
        %v957 = vunpack.c.l.b16 %v443
        %v958 = vunpack.c.l.b16 %v444
        %v959 = vunpack.c.l.b16 %v445
        %v960 = vunpack.c.l.b16 %v446
        %v961 = vunpack.c.l.b16 %v447
        %v962 = vunpack.c.l.b16 %v448
        %v963 = vunpack.c.l.b16 %v449
        %v964 = vunpack.c.l.b16 %v450
        %v965 = vunpack.c.l.b16 %v451
        %v966 = vunpack.c.l.b16 %v452
        %v967 = vunpack.c.l.b16 %v453
        %v968 = vunpack.c.l.b16 %v454
        %v969 = vunpack.c.l.b16 %v455
        %v970 = vunpack.c.l.b16 %v456
        %v971 = vunpack.c.l.b16 %v457
        %v972 = vunpack.c.l.b16 %v458
        %v973 = vunpack.c.l.b16 %v459
        %v974 = vunpack.c.l.b16 %v460
        %v975 = vunpack.c.l.b16 %v461
        %v976 = vunpack.c.l.b16 %v462
        %v977 = vunpack.c.l.b16 %v463
        %v978 = vunpack.c.l.b16 %v464
        %v979 = vunpack.c.l.b16 %v465
        %v980 = vunpack.c.l.b16 %v466
        %v981 = vunpack.c.l.b16 %v467
        %v982 = vunpack.c.l.b16 %v468
        %v983 = vunpack.c.l.b16 %v469
        %v984 = vunpack.c.l.b16 %v470
        %v985 = vunpack.c.l.b16 %v471
        %v986 = vunpack.c.l.b16 %v472
        %v987 = vunpack.c.l.b16 %v473
        %v988 = vunpack.c.l.b16 %v474
        %v989 = vunpack.c.l.b16 %v475
        %v990 = vunpack.c.l.b16 %v476
        %v991 = vunpack.c.l.b16 %v477
        %v992 = vunpack.c.l.b16 %v478
        %v993 = vunpack.c.l.b16 %v479
        %v994 = vunpack.c.l.b16 %v480
        %v995 = vunpack.c.l.b16 %v481
        %v996 = vunpack.c.l.b16 %v482
        %v997 = vunpack.c.l.b16 %v483
        %v998 = vunpack.c.l.b16 %v484
        %v999 = vunpack.c.l.b16 %v485
        %v1000 = vunpack.c.l.b16 %v486
        %v1001 = vunpack.c.l.b16 %v487
        %v1002 = vunpack.c.l.b16 %v488
        %v1003 = vunpack.c.l.b16 %v489
        %v1004 = vunpack.c.l.b16 %v490
        %v1005 = vunpack.c.l.b16 %v491
        %v1006 = vunpack.c.l.b16 %v492
        %v1007 = vunpack.c.l.b16 %v493
        %v1008 = vunpack.c.l.b16 %v494
        %v1009 = vunpack.c.l.b16 %v495
        %v1010 = vunpack.c.l.b16 %v496
        %v1011 = vunpack.c.l.b16 %v497
        %v1012 = vunpack.c.l.b16 %v498
        %v1013 = vunpack.c.l.b16 %v499
        %v1014 = vunpack.c.l.b16 %v500
        %v1015 = vunpack.c.l.b16 %v501
        %v1016 = vunpack.c.l.b16 %v502
        %v1017 = vunpack.c.l.b16 %v503
        %v1018 = vunpack.c.l.b16 %v504
        %v1019 = vunpack.c.l.b16 %v505
        %v1020 = vpack.c.b16 %v765, %v764
        %v1021 = vpack.c.b16 %v767, %v766
        %v1022 = vpack.c.b16 %v769, %v768
        %v1023 = vpack.c.b16 %v771, %v770
        %v1024 = vpack.c.b16 %v773, %v772
        %v1025 = vpack.c.b16 %v775, %v774
        %v1026 = vpack.c.b16 %v777, %v776
        %v1027 = vpack.c.b16 %v779, %v778
        %v1028 = vpack.c.b16 %v781, %v780
        %v1029 = vpack.c.b16 %v783, %v782
        %v1030 = vpack.c.b16 %v785, %v784
        %v1031 = vpack.c.b16 %v787, %v786
        %v1032 = vpack.c.b16 %v789, %v788
        %v1033 = vpack.c.b16 %v791, %v790
        %v1034 = vpack.c.b16 %v793, %v792
        %v1035 = vpack.c.b16 %v795, %v794
        %v1036 = vpack.c.b16 %v797, %v796
        %v1037 = vpack.c.b16 %v799, %v798
        %v1038 = vpack.c.b16 %v801, %v800
        %v1039 = vpack.c.b16 %v803, %v802
        %v1040 = vpack.c.b16 %v805, %v804
        %v1041 = vpack.c.b16 %v807, %v806
        %v1042 = vpack.c.b16 %v809, %v808
        %v1043 = vpack.c.b16 %v811, %v810
        %v1044 = vpack.c.b16 %v813, %v812
        %v1045 = vpack.c.b16 %v815, %v814
        %v1046 = vpack.c.b16 %v817, %v816
        %v1047 = vpack.c.b16 %v819, %v818
        %v1048 = vpack.c.b16 %v821, %v820
        %v1049 = vpack.c.b16 %v823, %v822
        %v1050 = vpack.c.b16 %v825, %v824
        %v1051 = vpack.c.b16 %v827, %v826
        %v1052 = vpack.c.b16 %v829, %v828
        %v1053 = vpack.c.b16 %v831, %v830
        %v1054 = vpack.c.b16 %v833, %v832
        %v1055 = vpack.c.b16 %v835, %v834
        %v1056 = vpack.c.b16 %v837, %v836
        %v1057 = vpack.c.b16 %v839, %v838
        %v1058 = vpack.c.b16 %v841, %v840
        %v1059 = vpack.c.b16 %v843, %v842
        %v1060 = vpack.c.b16 %v845, %v844
        %v1061 = vpack.c.b16 %v847, %v846
        %v1062 = vpack.c.b16 %v849, %v848
        %v1063 = vpack.c.b16 %v851, %v850
        %v1064 = vpack.c.b16 %v853, %v852
        %v1065 = vpack.c.b16 %v855, %v854
        %v1066 = vpack.c.b16 %v857, %v856
        %v1067 = vpack.c.b16 %v859, %v858
        %v1068 = vpack.c.b16 %v861, %v860
        %v1069 = vpack.c.b16 %v863, %v862
        %v1070 = vpack.c.b16 %v865, %v864
        %v1071 = vpack.c.b16 %v867, %v866
        %v1072 = vpack.c.b16 %v869, %v868
        %v1073 = vpack.c.b16 %v871, %v870
        %v1074 = vpack.c.b16 %v873, %v872
        %v1075 = vpack.c.b16 %v875, %v874
        %v1076 = vpack.c.b16 %v877, %v876
        %v1077 = vpack.c.b16 %v879, %v878
        %v1078 = vpack.c.b16 %v881, %v880
        %v1079 = vpack.c.b16 %v883, %v882
        %v1080 = vpack.c.b16 %v885, %v884
        %v1081 = vpack.c.b16 %v887, %v886
        %v1082 = vpack.c.b16 %v889, %v888
        %v1083 = vpack.c.b16 %v891, %v890
        %v1084 = vpack.c.b16 %v893, %v892
        %v1085 = vpack.c.b16 %v895, %v894
        %v1086 = vpack.c.b16 %v897, %v896
        %v1087 = vpack.c.b16 %v899, %v898
        %v1088 = vpack.c.b16 %v901, %v900
        %v1089 = vpack.c.b16 %v903, %v902
        %v1090 = vpack.c.b16 %v905, %v904
        %v1091 = vpack.c.b16 %v907, %v906
        %v1092 = vpack.c.b16 %v909, %v908
        %v1093 = vpack.c.b16 %v911, %v910
        %v1094 = vpack.c.b16 %v913, %v912
        %v1095 = vpack.c.b16 %v915, %v914
        %v1096 = vpack.c.b16 %v917, %v916
        %v1097 = vpack.c.b16 %v919, %v918
        %v1098 = vpack.c.b16 %v921, %v920
        %v1099 = vpack.c.b16 %v923, %v922
        %v1100 = vpack.c.b16 %v925, %v924
        %v1101 = vpack.c.b16 %v927, %v926
        %v1102 = vpack.c.b16 %v929, %v928
        %v1103 = vpack.c.b16 %v931, %v930
        %v1104 = vpack.c.b16 %v933, %v932
        %v1105 = vpack.c.b16 %v935, %v934
        %v1106 = vpack.c.b16 %v937, %v936
        %v1107 = vpack.c.b16 %v939, %v938
        %v1108 = vpack.c.b16 %v941, %v940
        %v1109 = vpack.c.b16 %v943, %v942
        %v1110 = vpack.c.b16 %v945, %v944
        %v1111 = vpack.c.b16 %v947, %v946
        %v1112 = vpack.c.b16 %v949, %v948
        %v1113 = vpack.c.b16 %v951, %v950
        %v1114 = vpack.c.b16 %v953, %v952
        %v1115 = vpack.c.b16 %v955, %v954
        %v1116 = vpack.c.b16 %v957, %v956
        %v1117 = vpack.c.b16 %v959, %v958
        %v1118 = vpack.c.b16 %v961, %v960
        %v1119 = vpack.c.b16 %v963, %v962
        %v1120 = vpack.c.b16 %v965, %v964
        %v1121 = vpack.c.b16 %v967, %v966
        %v1122 = vpack.c.b16 %v969, %v968
        %v1123 = vpack.c.b16 %v971, %v970
        %v1124 = vpack.c.b16 %v973, %v972
        %v1125 = vpack.c.b16 %v975, %v974
        %v1126 = vpack.c.b16 %v977, %v976
        %v1127 = vpack.c.b16 %v979, %v978
        %v1128 = vpack.c.b16 %v981, %v980
        %v1129 = vpack.c.b16 %v983, %v982
        %v1130 = vpack.c.b16 %v985, %v984
        %v1131 = vpack.c.b16 %v987, %v986
        %v1132 = vpack.c.b16 %v989, %v988
        %v1133 = vpack.c.b16 %v991, %v990
        %v1134 = vpack.c.b16 %v993, %v992
        %v1135 = vpack.c.b16 %v995, %v994
        %v1136 = vpack.c.b16 %v997, %v996
        %v1137 = vpack.c.b16 %v999, %v998
        %v1138 = vpack.c.b16 %v1001, %v1000
        %v1139 = vpack.c.b16 %v1003, %v1002
        %v1140 = vpack.c.b16 %v1005, %v1004
        %v1141 = vpack.c.b16 %v1007, %v1006
        %v1142 = vpack.c.b16 %v1009, %v1008
        %v1143 = vpack.c.b16 %v1011, %v1010
        %v1144 = vpack.c.b16 %v1013, %v1012
        %v1145 = vpack.c.b16 %v1015, %v1014
        %v1146 = vpack.c.b16 %v1017, %v1016
        %v1147 = vpack.c.b16 %v1019, %v1018
        %1276 = vmatprep.subr.bf16.mxu0 0
        %1277 = vmatpush1.bf16.msra.mxu0 %v1020
        %1278 = vmatprep.subr.bf16.mxu0 0
        %1279 = vmatpush1.bf16.msra.mxu0 %v1021
        %1280 = vmatprep.subr.bf16.mxu0 0
        %1281 = vmatpush1.bf16.msra.mxu0 %v1022
        %1282 = vmatprep.subr.bf16.mxu0 0
        %1283 = vmatpush1.bf16.msra.mxu0 %v1023
        %1284 = vmatprep.subr.bf16.mxu0 0
        %1285 = vmatpush1.bf16.msra.mxu0 %v1024
        %1286 = vmatprep.subr.bf16.mxu0 0
        %1287 = vmatpush1.bf16.msra.mxu0 %v1025
        %1288 = vmatprep.subr.bf16.mxu0 0
        %1289 = vmatpush1.bf16.msra.mxu0 %v1026
        %1290 = vmatprep.subr.bf16.mxu0 0
        %1291 = vmatpush1.bf16.msra.mxu0 %v1027
        %1292 = vmatprep.subr.bf16.mxu0 0
        %1293 = vmatpush1.bf16.msra.mxu0 %v1028
        %1294 = vmatprep.subr.bf16.mxu0 0
        %1295 = vmatpush1.bf16.msra.mxu0 %v1029
        %1296 = vmatprep.subr.bf16.mxu0 0
        %1297 = vmatpush1.bf16.msra.mxu0 %v1030
        %1298 = vmatprep.subr.bf16.mxu0 0
        %1299 = vmatpush1.bf16.msra.mxu0 %v1031
        %1300 = vmatprep.subr.bf16.mxu0 0
        %1301 = vmatpush1.bf16.msra.mxu0 %v1032
        %1302 = vmatprep.subr.bf16.mxu0 0
        %1303 = vmatpush1.bf16.msra.mxu0 %v1033
        %1304 = vmatprep.subr.bf16.mxu0 0
        %1305 = vmatpush1.bf16.msra.mxu0 %v1034
        %1306 = vmatprep.subr.bf16.mxu0 0
        %1307 = vmatpush1.bf16.msra.mxu0 %v1035
        %1308 = vmatprep.mubr.bf16.mxu0 %v235
        %1309 = vmatmul.mubr.bf16.gmra.mrb[0].mxu0 %v234
        %v1310 = vpop.f32.mrb[0].mxu0
        %v1311 = vadd.f32 %v507, %v1310
        %v1312 = vpop.f32.mrb[0].mxu0
        %v1313 = vpop.f32.mrb[0].mxu0
        %v1314 = vadd.f32 %v507, %v1313
        %v1315 = vpop.f32.mrb[0].mxu0
        %1316 = vdwg.mxu0
        %1317 = vmatprep.subr.bf16.mxu0 0
        %1318 = vmatpush1.bf16.msra.mxu0 %v1036
        %1319 = vmatprep.subr.bf16.mxu0 0
        %1320 = vmatpush1.bf16.msra.mxu0 %v1037
        %1321 = vmatprep.subr.bf16.mxu0 0
        %1322 = vmatpush1.bf16.msra.mxu0 %v1038
        %1323 = vmatprep.subr.bf16.mxu0 0
        %1324 = vmatpush1.bf16.msra.mxu0 %v1039
        %1325 = vmatprep.subr.bf16.mxu0 0
        %1326 = vmatpush1.bf16.msra.mxu0 %v1040
        %1327 = vmatprep.subr.bf16.mxu0 0
        %1328 = vmatpush1.bf16.msra.mxu0 %v1041
        %1329 = vmatprep.subr.bf16.mxu0 0
        %1330 = vmatpush1.bf16.msra.mxu0 %v1042
        %1331 = vmatprep.subr.bf16.mxu0 0
        %1332 = vmatpush1.bf16.msra.mxu0 %v1043
        %1333 = vmatprep.subr.bf16.mxu0 0
        %1334 = vmatpush1.bf16.msra.mxu0 %v1044
        %1335 = vmatprep.subr.bf16.mxu0 0
        %1336 = vmatpush1.bf16.msra.mxu0 %v1045
        %1337 = vmatprep.subr.bf16.mxu0 0
        %1338 = vmatpush1.bf16.msra.mxu0 %v1046
        %1339 = vmatprep.subr.bf16.mxu0 0
        %1340 = vmatpush1.bf16.msra.mxu0 %v1047
        %1341 = vmatprep.subr.bf16.mxu0 0
        %1342 = vmatpush1.bf16.msra.mxu0 %v1048
        %1343 = vmatprep.subr.bf16.mxu0 0
        %1344 = vmatpush1.bf16.msra.mxu0 %v1049
        %1345 = vmatprep.subr.bf16.mxu0 0
        %1346 = vmatpush1.bf16.msra.mxu0 %v1050
        %1347 = vmatprep.subr.bf16.mxu0 0
        %1348 = vmatpush1.bf16.msra.mxu0 %v1051
        %1349 = vmatprep.mubr.bf16.mxu0 %v237
        %1350 = vmatmul.mubr.bf16.gmra.mrb[0].mxu0 %v236
        %v1351 = vpop.f32.mrb[0].mxu0
        %v1352 = vadd.f32 %v1311, %v1351
        %v1353 = vpop.f32.mrb[0].mxu0
        %v1354 = vpop.f32.mrb[0].mxu0
        %v1355 = vadd.f32 %v1314, %v1354
        %v1356 = vpop.f32.mrb[0].mxu0
        %1357 = vdwg.mxu0
        %1358 = vmatprep.subr.bf16.mxu0 0
        %1359 = vmatpush1.bf16.msra.mxu0 %v1052
        %1360 = vmatprep.subr.bf16.mxu0 0
        %1361 = vmatpush1.bf16.msra.mxu0 %v1053
        %1362 = vmatprep.subr.bf16.mxu0 0
        %1363 = vmatpush1.bf16.msra.mxu0 %v1054
        %1364 = vmatprep.subr.bf16.mxu0 0
        %1365 = vmatpush1.bf16.msra.mxu0 %v1055
        %1366 = vmatprep.subr.bf16.mxu0 0
        %1367 = vmatpush1.bf16.msra.mxu0 %v1056
        %1368 = vmatprep.subr.bf16.mxu0 0
        %1369 = vmatpush1.bf16.msra.mxu0 %v1057
        %1370 = vmatprep.subr.bf16.mxu0 0
        %1371 = vmatpush1.bf16.msra.mxu0 %v1058
        %1372 = vmatprep.subr.bf16.mxu0 0
        %1373 = vmatpush1.bf16.msra.mxu0 %v1059
        %1374 = vmatprep.subr.bf16.mxu0 0
        %1375 = vmatpush1.bf16.msra.mxu0 %v1060
        %1376 = vmatprep.subr.bf16.mxu0 0
        %1377 = vmatpush1.bf16.msra.mxu0 %v1061
        %1378 = vmatprep.subr.bf16.mxu0 0
        %1379 = vmatpush1.bf16.msra.mxu0 %v1062
        %1380 = vmatprep.subr.bf16.mxu0 0
        %1381 = vmatpush1.bf16.msra.mxu0 %v1063
        %1382 = vmatprep.subr.bf16.mxu0 0
        %1383 = vmatpush1.bf16.msra.mxu0 %v1064
        %1384 = vmatprep.subr.bf16.mxu0 0
        %1385 = vmatpush1.bf16.msra.mxu0 %v1065
        %1386 = vmatprep.subr.bf16.mxu0 0
        %1387 = vmatpush1.bf16.msra.mxu0 %v1066
        %1388 = vmatprep.subr.bf16.mxu0 0
        %1389 = vmatpush1.bf16.msra.mxu0 %v1067
        %1390 = vmatprep.mubr.bf16.mxu0 %v239
        %1391 = vmatmul.mubr.bf16.gmra.mrb[0].mxu0 %v238
        %v1392 = vpop.f32.mrb[0].mxu0
        %v1393 = vadd.f32 %v1352, %v1392
        %v1394 = vpop.f32.mrb[0].mxu0
        %v1395 = vpop.f32.mrb[0].mxu0
        %v1396 = vadd.f32 %v1355, %v1395
        %v1397 = vpop.f32.mrb[0].mxu0
        %1398 = vdwg.mxu0
        %1399 = vmatprep.subr.bf16.mxu0 0
        %1400 = vmatpush1.bf16.msra.mxu0 %v1068
        %1401 = vmatprep.subr.bf16.mxu0 0
        %1402 = vmatpush1.bf16.msra.mxu0 %v1069
        %1403 = vmatprep.subr.bf16.mxu0 0
        %1404 = vmatpush1.bf16.msra.mxu0 %v1070
        %1405 = vmatprep.subr.bf16.mxu0 0
        %1406 = vmatpush1.bf16.msra.mxu0 %v1071
        %1407 = vmatprep.subr.bf16.mxu0 0
        %1408 = vmatpush1.bf16.msra.mxu0 %v1072
        %1409 = vmatprep.subr.bf16.mxu0 0
        %1410 = vmatpush1.bf16.msra.mxu0 %v1073
        %1411 = vmatprep.subr.bf16.mxu0 0
        %1412 = vmatpush1.bf16.msra.mxu0 %v1074
        %1413 = vmatprep.subr.bf16.mxu0 0
        %1414 = vmatpush1.bf16.msra.mxu0 %v1075
        %1415 = vmatprep.subr.bf16.mxu0 0
        %1416 = vmatpush1.bf16.msra.mxu0 %v1076
        %1417 = vmatprep.subr.bf16.mxu0 0
        %1418 = vmatpush1.bf16.msra.mxu0 %v1077
        %1419 = vmatprep.subr.bf16.mxu0 0
        %1420 = vmatpush1.bf16.msra.mxu0 %v1078
        %1421 = vmatprep.subr.bf16.mxu0 0
        %1422 = vmatpush1.bf16.msra.mxu0 %v1079
        %1423 = vmatprep.subr.bf16.mxu0 0
        %1424 = vmatpush1.bf16.msra.mxu0 %v1080
        %1425 = vmatprep.subr.bf16.mxu0 0
        %1426 = vmatpush1.bf16.msra.mxu0 %v1081
        %1427 = vmatprep.subr.bf16.mxu0 0
        %1428 = vmatpush1.bf16.msra.mxu0 %v1082
        %1429 = vmatprep.subr.bf16.mxu0 0
        %1430 = vmatpush1.bf16.msra.mxu0 %v1083
        %1431 = vmatprep.mubr.bf16.mxu0 %v241
        %1432 = vmatmul.mubr.bf16.gmra.mrb[0].mxu0 %v240
        %v1433 = vpop.f32.mrb[0].mxu0
        %v1434 = vadd.f32 %v1393, %v1433
        %v1435 = vpop.f32.mrb[0].mxu0
        %v1436 = vpop.f32.mrb[0].mxu0
        %v1437 = vadd.f32 %v1396, %v1436
        %v1438 = vpop.f32.mrb[0].mxu0
        %1439 = vdwg.mxu0
        %1440 = vmatprep.subr.bf16.mxu0 0
        %1441 = vmatpush1.bf16.msra.mxu0 %v1084
        %1442 = vmatprep.subr.bf16.mxu0 0
        %1443 = vmatpush1.bf16.msra.mxu0 %v1085
        %1444 = vmatprep.subr.bf16.mxu0 0
        %1445 = vmatpush1.bf16.msra.mxu0 %v1086
        %1446 = vmatprep.subr.bf16.mxu0 0
        %1447 = vmatpush1.bf16.msra.mxu0 %v1087
        %1448 = vmatprep.subr.bf16.mxu0 0
        %1449 = vmatpush1.bf16.msra.mxu0 %v1088
        %1450 = vmatprep.subr.bf16.mxu0 0
        %1451 = vmatpush1.bf16.msra.mxu0 %v1089
        %1452 = vmatprep.subr.bf16.mxu0 0
        %1453 = vmatpush1.bf16.msra.mxu0 %v1090
        %1454 = vmatprep.subr.bf16.mxu0 0
        %1455 = vmatpush1.bf16.msra.mxu0 %v1091
        %1456 = vmatprep.subr.bf16.mxu0 0
        %1457 = vmatpush1.bf16.msra.mxu0 %v1092
        %1458 = vmatprep.subr.bf16.mxu0 0
        %1459 = vmatpush1.bf16.msra.mxu0 %v1093
        %1460 = vmatprep.subr.bf16.mxu0 0
        %1461 = vmatpush1.bf16.msra.mxu0 %v1094
        %1462 = vmatprep.subr.bf16.mxu0 0
        %1463 = vmatpush1.bf16.msra.mxu0 %v1095
        %1464 = vmatprep.subr.bf16.mxu0 0
        %1465 = vmatpush1.bf16.msra.mxu0 %v1096
        %1466 = vmatprep.subr.bf16.mxu0 0
        %1467 = vmatpush1.bf16.msra.mxu0 %v1097
        %1468 = vmatprep.subr.bf16.mxu0 0
        %1469 = vmatpush1.bf16.msra.mxu0 %v1098
        %1470 = vmatprep.subr.bf16.mxu0 0
        %1471 = vmatpush1.bf16.msra.mxu0 %v1099
        %1472 = vmatprep.mubr.bf16.mxu0 %v243
        %1473 = vmatmul.mubr.bf16.gmra.mrb[0].mxu0 %v242
        %v1474 = vpop.f32.mrb[0].mxu0
        %v1475 = vadd.f32 %v1434, %v1474
        %v1476 = vpop.f32.mrb[0].mxu0
        %v1477 = vpop.f32.mrb[0].mxu0
        %v1478 = vadd.f32 %v1437, %v1477
        %v1479 = vpop.f32.mrb[0].mxu0
        %1480 = vdwg.mxu0
        %1481 = vmatprep.subr.bf16.mxu0 0
        %1482 = vmatpush1.bf16.msra.mxu0 %v1100
        %1483 = vmatprep.subr.bf16.mxu0 0
        %1484 = vmatpush1.bf16.msra.mxu0 %v1101
        %1485 = vmatprep.subr.bf16.mxu0 0
        %1486 = vmatpush1.bf16.msra.mxu0 %v1102
        %1487 = vmatprep.subr.bf16.mxu0 0
        %1488 = vmatpush1.bf16.msra.mxu0 %v1103
        %1489 = vmatprep.subr.bf16.mxu0 0
        %1490 = vmatpush1.bf16.msra.mxu0 %v1104
        %1491 = vmatprep.subr.bf16.mxu0 0
        %1492 = vmatpush1.bf16.msra.mxu0 %v1105
        %1493 = vmatprep.subr.bf16.mxu0 0
        %1494 = vmatpush1.bf16.msra.mxu0 %v1106
        %1495 = vmatprep.subr.bf16.mxu0 0
        %1496 = vmatpush1.bf16.msra.mxu0 %v1107
        %1497 = vmatprep.subr.bf16.mxu0 0
        %1498 = vmatpush1.bf16.msra.mxu0 %v1108
        %1499 = vmatprep.subr.bf16.mxu0 0
        %1500 = vmatpush1.bf16.msra.mxu0 %v1109
        %1501 = vmatprep.subr.bf16.mxu0 0
        %1502 = vmatpush1.bf16.msra.mxu0 %v1110
        %1503 = vmatprep.subr.bf16.mxu0 0
        %1504 = vmatpush1.bf16.msra.mxu0 %v1111
        %1505 = vmatprep.subr.bf16.mxu0 0
        %1506 = vmatpush1.bf16.msra.mxu0 %v1112
        %1507 = vmatprep.subr.bf16.mxu0 0
        %1508 = vmatpush1.bf16.msra.mxu0 %v1113
        %1509 = vmatprep.subr.bf16.mxu0 0
        %1510 = vmatpush1.bf16.msra.mxu0 %v1114
        %1511 = vmatprep.subr.bf16.mxu0 0
        %1512 = vmatpush1.bf16.msra.mxu0 %v1115
        %1513 = vmatprep.mubr.bf16.mxu0 %v245
        %1514 = vmatmul.mubr.bf16.gmra.mrb[0].mxu0 %v244
        %v1515 = vpop.f32.mrb[0].mxu0
        %v1516 = vadd.f32 %v1475, %v1515
        %v1517 = vpop.f32.mrb[0].mxu0
        %v1518 = vpop.f32.mrb[0].mxu0
        %v1519 = vadd.f32 %v1478, %v1518
        %v1520 = vpop.f32.mrb[0].mxu0
        %1521 = vdwg.mxu0
        %1522 = vmatprep.subr.bf16.mxu0 0
        %1523 = vmatpush1.bf16.msra.mxu0 %v1116
        %1524 = vmatprep.subr.bf16.mxu0 0
        %1525 = vmatpush1.bf16.msra.mxu0 %v1117
        %1526 = vmatprep.subr.bf16.mxu0 0
        %1527 = vmatpush1.bf16.msra.mxu0 %v1118
        %1528 = vmatprep.subr.bf16.mxu0 0
        %1529 = vmatpush1.bf16.msra.mxu0 %v1119
        %1530 = vmatprep.subr.bf16.mxu0 0
        %1531 = vmatpush1.bf16.msra.mxu0 %v1120
        %1532 = vmatprep.subr.bf16.mxu0 0
        %1533 = vmatpush1.bf16.msra.mxu0 %v1121
        %1534 = vmatprep.subr.bf16.mxu0 0
        %1535 = vmatpush1.bf16.msra.mxu0 %v1122
        %1536 = vmatprep.subr.bf16.mxu0 0
        %1537 = vmatpush1.bf16.msra.mxu0 %v1123
        %1538 = vmatprep.subr.bf16.mxu0 0
        %1539 = vmatpush1.bf16.msra.mxu0 %v1124
        %1540 = vmatprep.subr.bf16.mxu0 0
        %1541 = vmatpush1.bf16.msra.mxu0 %v1125
        %1542 = vmatprep.subr.bf16.mxu0 0
        %1543 = vmatpush1.bf16.msra.mxu0 %v1126
        %1544 = vmatprep.subr.bf16.mxu0 0
        %1545 = vmatpush1.bf16.msra.mxu0 %v1127
        %1546 = vmatprep.subr.bf16.mxu0 0
        %1547 = vmatpush1.bf16.msra.mxu0 %v1128
        %1548 = vmatprep.subr.bf16.mxu0 0
        %1549 = vmatpush1.bf16.msra.mxu0 %v1129
        %1550 = vmatprep.subr.bf16.mxu0 0
        %1551 = vmatpush1.bf16.msra.mxu0 %v1130
        %1552 = vmatprep.subr.bf16.mxu0 0
        %1553 = vmatpush1.bf16.msra.mxu0 %v1131
        %1554 = vmatprep.mubr.bf16.mxu0 %v247
        %1555 = vmatmul.mubr.bf16.gmra.mrb[0].mxu0 %v246
        %v1556 = vpop.f32.mrb[0].mxu0
        %v1557 = vadd.f32 %v1516, %v1556
        %v1558 = vpop.f32.mrb[0].mxu0
        %v1559 = vpop.f32.mrb[0].mxu0
        %v1560 = vadd.f32 %v1519, %v1559
        %v1561 = vpop.f32.mrb[0].mxu0
        %1562 = vdwg.mxu0
        %1563 = vmatprep.subr.bf16.mxu0 0
        %1564 = vmatpush1.bf16.msra.mxu0 %v1132
        %1565 = vmatprep.subr.bf16.mxu0 0
        %1566 = vmatpush1.bf16.msra.mxu0 %v1133
        %1567 = vmatprep.subr.bf16.mxu0 0
        %1568 = vmatpush1.bf16.msra.mxu0 %v1134
        %1569 = vmatprep.subr.bf16.mxu0 0
        %1570 = vmatpush1.bf16.msra.mxu0 %v1135
        %1571 = vmatprep.subr.bf16.mxu0 0
        %1572 = vmatpush1.bf16.msra.mxu0 %v1136
        %1573 = vmatprep.subr.bf16.mxu0 0
        %1574 = vmatpush1.bf16.msra.mxu0 %v1137
        %1575 = vmatprep.subr.bf16.mxu0 0
        %1576 = vmatpush1.bf16.msra.mxu0 %v1138
        %1577 = vmatprep.subr.bf16.mxu0 0
        %1578 = vmatpush1.bf16.msra.mxu0 %v1139
        %1579 = vmatprep.subr.bf16.mxu0 0
        %1580 = vmatpush1.bf16.msra.mxu0 %v1140
        %1581 = vmatprep.subr.bf16.mxu0 0
        %1582 = vmatpush1.bf16.msra.mxu0 %v1141
        %1583 = vmatprep.subr.bf16.mxu0 0
        %1584 = vmatpush1.bf16.msra.mxu0 %v1142
        %1585 = vmatprep.subr.bf16.mxu0 0
        %1586 = vmatpush1.bf16.msra.mxu0 %v1143
        %1587 = vmatprep.subr.bf16.mxu0 0
        %1588 = vmatpush1.bf16.msra.mxu0 %v1144
        %1589 = vmatprep.subr.bf16.mxu0 0
        %1590 = vmatpush1.bf16.msra.mxu0 %v1145
        %1591 = vmatprep.subr.bf16.mxu0 0
        %1592 = vmatpush1.bf16.msra.mxu0 %v1146
        %1593 = vmatprep.subr.bf16.mxu0 0
        %1594 = vmatpush1.bf16.msra.mxu0 %v1147
        %1595 = vmatprep.mubr.bf16.mxu0 %v249
        %1596 = vmatmul.mubr.bf16.gmra.mrb[0].mxu0 %v248
        %v1597 = vpop.f32.mrb[0].mxu0
        %v1598 = vadd.f32 %v1557, %v1597
        %v1599 = vpop.f32.mrb[0].mxu0
        %v1600 = vpop.f32.mrb[0].mxu0
        %v1601 = vadd.f32 %v1560, %v1600
        %v1602 = vpop.f32.mrb[0].mxu0
        %1603 = vdwg.mxu0
        %v1604 = vmax.f32 %v1598, 0.0
        %v1605 = vmax.f32 %v1601, 0.0
        %1606 = vst [vmem:[%s178] sm:$0xff] %v1604
        %1607 = vst [vmem:[%s178 + $0x8] sm:$0xff] %v1605
        %s1608 = sand.u32 %s91, 1
        %s1609 = sand.u32 %s91, 1
        %s1610 = smul.addr %s1609, 16
        %s1611 = scalar_lea.vmem [#allocation3], %s1610
        // Predicated region
        $region33: #{actor_forward.1} parent=31 // pred_check
          %p1612 = pneg %p101
        $region34: #{actor_forward.1} parent=31 // pred_check_branch
          %1614 = sbr.rel (%p1612) target = $region36
        $region35: #{actor_forward.1} parent=31 // pred_region
          %s1615 = smul.u32 2, %s15
          %s1616 = ssub.s32 3, %s1615
          %p1617 = scmp.lt.s32.totalorder %s1616, 2
          %s1618 = scalar_select %p1617, %s1616, 2
          %s1619 = smul.u32 128, %s1618
          %p1620 = scmp.ne.s32.totalorder 0, %s1619
          %s1621 = smul.addr %s1615, 8
          %s1622 = scalar_lea.vmem %s3, %s1621
          // Predicated region
          $region37: #{actor_forward.1} parent=35 // pred_check
            %p1623 = pneg %p1620
          $region38: #{actor_forward.1} parent=35 // pred_check_branch
            %1625 = sbr.rel (%p1623) target = $region40
          $region39: #{actor_forward.1} parent=35 // pred_region
            // Predicated region
            $region41: #{actor_forward.1} parent=39 // pred_check
              _
            $region42: #{actor_forward.1} parent=39 // pred_check_branch
              %1627 = sbr.rel (0) target = $region44
            $region43: #{actor_forward.1} parent=39 // pred_region
              // Predicated region
              $region63: #{actor_forward.1} parent=43 // pred_check
                _
              $region64: #{actor_forward.1} parent=43 // pred_check_branch
                %1678 = sbr.rel (0) target = $region66
              $region65: #{actor_forward.1} parent=43 // pred_region
                %s1679 = sshrl.u32 %s1618, 1
                // While loop
                $region67: #{actor_forward.1} parent=65 // loop_pre_header
                  _
                $region68: #{actor_forward.1} parent=65 // loop_header
                  %s1681 = sphi 0, %s1683
                  %p1682 = scmp.ge.s32.totalorder %s1681, %s1679
                  %s1686 = sphi 0, %s1695
                  %s1687 = sphi %s1611, %s1698
                  %s1688 = sphi %s1622, %s1699
                $region69: #{actor_forward.1} parent=65 // loop_header_branch
                  %1685 = sbr.rel (%p1682) target = $region73
                $region70: #{actor_forward.1} parent=65 // loop_body
                  %v1689 = vld [vmem:[%s1687] sm:$0xff]
                  %1690 = vst [vmem:[%s1688] sm:$0xff] %v1689
                  %v1691 = vld [vmem:[%s1687 + $0x8] sm:$0xff]
                  %1692 = vst [vmem:[%s1688 + $0x8] sm:$0xff] %v1691
                  %s1693 = sadd.s32 1, %s1686
                  %p1694 = scmp.ge.s32.totalorder %s1693, %s1679
                  %s1695 = scalar_select %p1694, 0, %s1693
                  %s1696 = smul.u32 %s1695, 16
                  %s1697 = smul.u32 %s1695, 16
                  %s1698 = scalar_lea.vmem %s1611, %s1696 [#allocation3]
                  %s1699 = scalar_lea.vmem %s1622, %s1697
                $region71: #{actor_forward.1} parent=65 // loop_footer
                  %s1683 = sadd.s32 %s1681, 1
                $region72: #{actor_forward.1} parent=65 // loop_footer_branch
                  %1680 = sbr.rel target = $region68
                $region73: #{actor_forward.1} parent=65 // loop_exit
                  _
                %s1700 = sshrl.u32 %s1618, 1
                %s1701 = sand.u32 %s1618, 1
                %s1702 = smul.u32 %s1700, 2
                %s1703 = smul.u32 8, %s1702
                %s1704 = scalar_lea.vmem %s1611, %s1703 [#allocation3]
                %s1705 = smul.u32 8, %s1702
                %s1706 = scalar_lea.vmem %s1622, %s1705
                // While loop
                $region74: #{actor_forward.1} parent=65 // loop_pre_header
                  _
                $region75: #{actor_forward.1} parent=65 // loop_header
                  %s1708 = sphi 0, %s1710
                  %p1709 = scmp.ge.s32.totalorder %s1708, %s1701
                  %s1713 = sphi 0, %s1720
                  %s1714 = sphi %s1704, %s1723
                  %s1715 = sphi %s1706, %s1724
                $region76: #{actor_forward.1} parent=65 // loop_header_branch
                  %1712 = sbr.rel (%p1709) target = $region80
                $region77: #{actor_forward.1} parent=65 // loop_body
                  %v1716 = vld [vmem:[%s1714] sm:$0xff]
                  %1717 = vst [vmem:[%s1715] sm:$0xff] %v1716
                  %s1718 = sadd.s32 1, %s1713
                  %p1719 = scmp.ge.s32.totalorder %s1718, %s1701
                  %s1720 = scalar_select %p1719, 0, %s1718
                  %s1721 = smul.u32 %s1720, 8
                  %s1722 = smul.u32 %s1720, 8
                  %s1723 = scalar_lea.vmem %s1704, %s1721 [#allocation3]
                  %s1724 = scalar_lea.vmem %s1706, %s1722
                $region78: #{actor_forward.1} parent=65 // loop_footer
                  %s1710 = sadd.s32 %s1708, 1
                $region79: #{actor_forward.1} parent=65 // loop_footer_branch
                  %1707 = sbr.rel target = $region75
                $region80: #{actor_forward.1} parent=65 // loop_exit
                  _
              $region66: #{actor_forward.1} parent=43 // pred_fallthru
                _
              // Predicated region
              $region81: #{actor_forward.1} parent=43 // pred_check
                _
              $region82: #{actor_forward.1} parent=43 // pred_check_branch
                %1726 = sbr.rel target = $region84
              $region83: #{actor_forward.1} parent=43 // pred_region
                _
              $region84: #{actor_forward.1} parent=43 // pred_fallthru
                _
            $region44: #{actor_forward.1} parent=39 // pred_fallthru
              _
            // Predicated region
            $region45: #{actor_forward.1} parent=39 // pred_check
              _
            $region46: #{actor_forward.1} parent=39 // pred_check_branch
              %1629 = sbr.rel target = $region48
            $region47: #{actor_forward.1} parent=39 // pred_region
              %s1631 = sshrl.u32 %s1618, 1
              // While loop
              $region49: #{actor_forward.1} parent=47 // loop_pre_header
                _
              $region50: #{actor_forward.1} parent=47 // loop_header
                %s1633 = sphi 0, %s1635
                %p1634 = scmp.ge.s32.totalorder %s1633, %s1631
                %s1638 = sphi 0, %s1647
                %s1639 = sphi %s1611, %s1650
                %s1640 = sphi %s1622, %s1651
              $region51: #{actor_forward.1} parent=47 // loop_header_branch
                %1637 = sbr.rel (%p1634) target = $region55
              $region52: #{actor_forward.1} parent=47 // loop_body
                %v1641 = vld [vmem:[%s1639] sm:$0xff]
                %1642 = vst [vmem:[%s1640] sm:$0xff] %v1641
                %v1643 = vld [vmem:[%s1639 + $0x8] sm:$0xff]
                %1644 = vst [vmem:[%s1640 + $0x8] sm:$0xff] %v1643
                %s1645 = sadd.s32 1, %s1638
                %p1646 = scmp.ge.s32.totalorder %s1645, %s1631
                %s1647 = scalar_select %p1646, 0, %s1645
                %s1648 = smul.u32 %s1647, 16
                %s1649 = smul.u32 %s1647, 16
                %s1650 = scalar_lea.vmem %s1611, %s1648 [#allocation3]
                %s1651 = scalar_lea.vmem %s1622, %s1649
              $region53: #{actor_forward.1} parent=47 // loop_footer
                %s1635 = sadd.s32 %s1633, 1
              $region54: #{actor_forward.1} parent=47 // loop_footer_branch
                %1632 = sbr.rel target = $region50
              $region55: #{actor_forward.1} parent=47 // loop_exit
                _
              %s1652 = sshrl.u32 %s1618, 1
              %s1653 = sand.u32 %s1618, 1
              %s1654 = smul.u32 %s1652, 2
              %s1655 = smul.u32 8, %s1654
              %s1656 = scalar_lea.vmem %s1611, %s1655 [#allocation3]
              %s1657 = smul.u32 8, %s1654
              %s1658 = scalar_lea.vmem %s1622, %s1657
              // While loop
              $region56: #{actor_forward.1} parent=47 // loop_pre_header
                _
              $region57: #{actor_forward.1} parent=47 // loop_header
                %s1660 = sphi 0, %s1662
                %p1661 = scmp.ge.s32.totalorder %s1660, %s1653
                %s1665 = sphi 0, %s1672
                %s1666 = sphi %s1656, %s1675
                %s1667 = sphi %s1658, %s1676
              $region58: #{actor_forward.1} parent=47 // loop_header_branch
                %1664 = sbr.rel (%p1661) target = $region62
              $region59: #{actor_forward.1} parent=47 // loop_body
                %v1668 = vld [vmem:[%s1666] sm:$0xff]
                %1669 = vst [vmem:[%s1667] sm:$0xff] %v1668
                %s1670 = sadd.s32 1, %s1665
                %p1671 = scmp.ge.s32.totalorder %s1670, %s1653
                %s1672 = scalar_select %p1671, 0, %s1670
                %s1673 = smul.u32 %s1672, 8
                %s1674 = smul.u32 %s1672, 8
                %s1675 = scalar_lea.vmem %s1656, %s1673 [#allocation3]
                %s1676 = scalar_lea.vmem %s1658, %s1674
              $region60: #{actor_forward.1} parent=47 // loop_footer
                %s1662 = sadd.s32 %s1660, 1
              $region61: #{actor_forward.1} parent=47 // loop_footer_branch
                %1659 = sbr.rel target = $region57
              $region62: #{actor_forward.1} parent=47 // loop_exit
                _
            $region48: #{actor_forward.1} parent=39 // pred_fallthru
              _
          $region40: #{actor_forward.1} parent=35 // pred_fallthru
            _
          %1727 = vnop
        $region36: #{actor_forward.1} parent=31 // pred_fallthru
          _
      $region32: #{actor_forward.1} parent=5 // pred_fallthru
        _
      %p1728 = scmp.le.s32.totalorder 2, %s10
      // Predicated region
      $region85: #{actor_forward.1} parent=5 // pred_check
        %p1729 = pneg %p1728
      $region86: #{actor_forward.1} parent=5 // pred_check_branch
        %1731 = sbr.rel (%p1729) target = $region88
      $region87: #{actor_forward.1} parent=5 // pred_region
        %s1732 = ssub.s32 %s10, 2
        // Predicated region
        $region89: #{actor_forward.1} parent=87 // pred_check
          %p1733 = pneg %p107
        $region90: #{actor_forward.1} parent=87 // pred_check_branch
          %1735 = sbr.rel (%p1733) target = $region92
        $region91: #{actor_forward.1} parent=87 // pred_region
          %s1736 = sand.u32 %s92, 1
          %s1737 = sand.u32 %s92, 1
          %s1738 = smul.addr %s1737, 16
          %s1739 = scalar_lea.vmem [#allocation3], %s1738
        $region92: #{actor_forward.1} parent=87 // pred_fallthru
          _
      $region88: #{actor_forward.1} parent=5 // pred_fallthru
        _
    $region6: #{actor_forward.1} parent=1 // loop_footer
      %s14 = sadd.s32 1, %s10
    $region7: #{actor_forward.1} parent=1 // loop_footer_branch
      %9 = sbr.rel target = $region3
    $region8: #{actor_forward.1} parent=1 // loop_exit
      _

</llo_original>
